<compile_context>
chip_gen: v5e
topology: v5e:2x2
jax: 0.10.0
libtpu: 0.0.40
codegen_flags: <defaults>
</compile_context>

<pallas_src>
import jax
import jax.numpy as jnp
from jax.experimental import pallas as pl
from jax.experimental.pallas import tpu as pltpu


def vae_kernel(
    x_ref,                # (TM, 784)  bf16
    w1e_ref, b1e_ref,     # (784, 400) bf16, (1, 400) f32
    wst_ref, bst_ref,     # (400, 40)  bf16, (1, 40)  f32   [fused mu|log_var]
    eps_ref,              # (TM, 20)   f32   standard-normal noise (randn_like)
    w1d_ref, b1d_ref,     # (20, 400)  bf16, (1, 400) f32
    w2d_ref, b2d_ref,     # (400, 784) bf16, (1, 784) f32
    y_ref,                # (TM, 784)  f32
    mu_ref,               # (TM, 20)   f32
    logvar_ref,           # (TM, 20)   f32
):
    x = x_ref[...]

    # ---- Encoder ----
    h = jnp.dot(x, w1e_ref[...], preferred_element_type=jnp.float32) + b1e_ref[...]
    h = jnp.maximum(h, 0.0)  # relu

    # Fused mu / log_var projection: one (400, 40) matmul instead of two x20.
    stats = (
        jnp.dot(h.astype(jnp.bfloat16), wst_ref[...],
                preferred_element_type=jnp.float32)
        + bst_ref[...]
    )
    mu = stats[:, :20]
    log_var = stats[:, 20:]

    # ---- Reparameterize: z = mu + eps * exp(0.5 * log_var) ----
    std = jnp.exp(0.5 * log_var)
    z = mu + eps_ref[...] * std

    # ---- Decoder ----
    hd = (
        jnp.dot(z.astype(jnp.bfloat16), w1d_ref[...],
                preferred_element_type=jnp.float32)
        + b1d_ref[...]
    )
    hd = jnp.maximum(hd, 0.0)  # relu
    logits = (
        jnp.dot(hd.astype(jnp.bfloat16), w2d_ref[...],
                preferred_element_type=jnp.float32)
        + b2d_ref[...]
    )
    # sigmoid: exp on EUP + approximate reciprocal on EUP (free vs. VPU divide).
    y = pl.reciprocal(1.0 + jnp.exp(-logits), approx=True)

    y_ref[...] = y
    mu_ref[...] = mu
    logvar_ref[...] = log_var


def _round_up(n, m):
    return ((n + m - 1) // m) * m


def vae_forward(x_nchw, params, eps, *, max_block_b=256):
    """x_nchw: (B, 1, 28, 28) float32, eps: (B, 20) float32.

    Returns (y, mu, log_var) in float32, matching the PyTorch forward.
    """
    B = x_nchw.shape[0]
    (w1e, b1e, w2e, b2e, w3e, b3e, w1d, b1d, w2d, b2d) = params

    # Fuse the mu / log_var projections into one weight / bias.
    w_st = jnp.concatenate([w2e, w3e], axis=1)   # (400, 40)
    b_st = jnp.concatenate([b2e, b3e], axis=1)   # (1, 40)

    # bf16 inputs for the MXU; biases stay f32 (added to f32 accumulators).
    bf16 = jnp.bfloat16
    x = x_nchw.reshape(B, 784).astype(bf16)      # == torch x.view(-1, 784)
    w1e_b, w_st_b, w1d_b, w2d_b = (w1e.astype(bf16), w_st.astype(bf16),
                                   w1d.astype(bf16), w2d.astype(bf16))
    eps = eps.astype(jnp.float32)

    # Batch tiling: tile must be a multiple of 8 (sublane); pad B up to it.
    tm = min(max_block_b, _round_up(B, 8))
    b_pad = _round_up(B, tm)
    if b_pad != B:
        x = jnp.pad(x, ((0, b_pad - B), (0, 0)))
        eps = jnp.pad(eps, ((0, b_pad - B), (0, 0)))
    grid = (b_pad // tm,)

    def row_spec(cols):
        # Tiled over the batch grid axis.
        return pl.BlockSpec((tm, cols), lambda i: (i, 0))

    def const_spec(shape):
        # Full-array block, constant index map -> stays resident across steps.
        return pl.BlockSpec(shape, lambda i: (0, 0))

    in_specs = [
        row_spec(784),                                   # x
        const_spec(w1e_b.shape), const_spec(b1e.shape),  # encoder fc1
        const_spec(w_st_b.shape), const_spec(b_st.shape),  # fused mu|logvar
        row_spec(20),                                    # eps
        const_spec(w1d_b.shape), const_spec(b1d.shape),  # decoder fc1
        const_spec(w2d_b.shape), const_spec(b2d.shape),  # decoder fc2
    ]
    out_shapes = (
        jax.ShapeDtypeStruct((b_pad, 784), jnp.float32),  # y
        jax.ShapeDtypeStruct((b_pad, 20), jnp.float32),   # mu
        jax.ShapeDtypeStruct((b_pad, 20), jnp.float32),   # log_var
    )
    # TODO(synk): y's 784-lane output could be padded to 896 (7*128) for fully
    # unmasked stores; skipped since the epilogue is not the bottleneck here.
    out_specs = (row_spec(784), row_spec(20), row_spec(20))

    y, mu, log_var = pl.pallas_call(
        vae_kernel,
        out_shape=out_shapes,
        grid=grid,
        in_specs=in_specs,
        out_specs=out_specs,
        compiler_params=pltpu.CompilerParams(
            dimension_semantics=("parallel",),   # megacore batch sharding (v7x)
            vmem_limit_bytes=16 << 20,           # real footprint is a few MiB
        ),
    )(x, w1e_b, b1e, w_st_b, b_st, eps, w1d_b, b1d, w2d_b, b2d)

    return y[:B], mu[:B], log_var[:B]


def init_params(key):
    """Deterministic init matching nn.Linear shapes.

    Weights are stored as (in_features, out_features) = transpose of torch's
    nn.Linear.weight, initialized uniform(-1/sqrt(fan_in), 1/sqrt(fan_in))
    like PyTorch's default.
    """
    def linear(key, fan_in, fan_out):
        kw, kb = jax.random.split(key)
        bound = 1.0 / jnp.sqrt(fan_in)
        w = jax.random.uniform(kw, (fan_in, fan_out), jnp.float32, -bound, bound)
        b = jax.random.uniform(kb, (1, fan_out), jnp.float32, -bound, bound)
        return w, b

    keys = jax.random.split(key, 5)
    w1e, b1e = linear(keys[0], 784, 400)  # encoder.fc1
    w2e, b2e = linear(keys[1], 400, 20)   # encoder.fc2 (mu)
    w3e, b3e = linear(keys[2], 400, 20)   # encoder.fc3 (log_var)
    w1d, b1d = linear(keys[3], 20, 400)   # decoder.fc1
    w2d, b2d = linear(keys[4], 400, 784)  # decoder.fc2
    return (w1e, b1e, w2e, b2e, w3e, b3e, w1d, b1d, w2d, b2d)


if __name__ == "__main__":
    key = jax.random.PRNGKey(0)
    k_param, k_x, k_eps = jax.random.split(key, 3)

    B = 8
    x = jax.random.uniform(k_x, (B, 1, 28, 28), jnp.float32)   # NCHW, MNIST-like
    params = init_params(k_param)
    eps = jax.random.normal(k_eps, (B, 20), jnp.float32)       # torch.randn_like(std)

    y, mu, log_var = vae_forward(x, params, eps)
    jax.block_until_ready((y, mu, log_var))

    # Pure-JAX reference of the same math (same bf16 weight/activation casts).
    (w1e, b1e, w2e, b2e, w3e, b3e, w1d, b1d, w2d, b2d) = params
    bf = jnp.bfloat16
    xf = x.reshape(B, 784).astype(bf)
    w_st = jnp.concatenate([w2e, w3e], axis=1).astype(bf)
    b_st = jnp.concatenate([b2e, b3e], axis=1)
    h = jnp.maximum(
        jnp.dot(xf, w1e.astype(bf), preferred_element_type=jnp.float32) + b1e, 0.0)
    stats = jnp.dot(h.astype(bf), w_st, preferred_element_type=jnp.float32) + b_st
    mu_ref = stats[:, :20]
    lv_ref = stats[:, 20:]
    z = mu_ref + eps * jnp.exp(0.5 * lv_ref)
    hd = jnp.maximum(
        jnp.dot(z.astype(bf), w1d.astype(bf), preferred_element_type=jnp.float32) + b1d,
        0.0)
    logits = jnp.dot(hd.astype(bf), w2d.astype(bf),
                     preferred_element_type=jnp.float32) + b2d
    y_ref = jax.nn.sigmoid(logits)

    assert y.shape == (B, 784) and mu.shape == (B, 20) and log_var.shape == (B, 20)
    assert jnp.allclose(mu, mu_ref, atol=1e-2, rtol=1e-2)
    assert jnp.allclose(log_var, lv_ref, atol=1e-2, rtol=1e-2)
    assert jnp.allclose(y, y_ref, atol=1e-2)   # approx reciprocal in sigmoid

    print("KERNEL_OK")
</pallas_src>

<mosaic_0001>
module attributes {stable_mosaic.version = 11 : i64} {
  func.func @vae_kernel(%arg0: i32, %arg1: memref<8x784xbf16, #tpu.memory_space<vmem>>, %arg2: memref<784x400xbf16, #tpu.memory_space<vmem>>, %arg3: memref<1x400xf32, #tpu.memory_space<vmem>>, %arg4: memref<400x40xbf16, #tpu.memory_space<vmem>>, %arg5: memref<1x40xf32, #tpu.memory_space<vmem>>, %arg6: memref<8x20xf32, #tpu.memory_space<vmem>>, %arg7: memref<20x400xbf16, #tpu.memory_space<vmem>>, %arg8: memref<1x400xf32, #tpu.memory_space<vmem>>, %arg9: memref<400x784xbf16, #tpu.memory_space<vmem>>, %arg10: memref<1x784xf32, #tpu.memory_space<vmem>>, %arg11: memref<8x784xf32, #tpu.memory_space<vmem>>, %arg12: memref<8x20xf32, #tpu.memory_space<vmem>>, %arg13: memref<8x20xf32, #tpu.memory_space<vmem>>) attributes {dimension_semantics = [#tpu.dimension_semantics<parallel>], iteration_bounds = array<i64: 1>, scalar_prefetch = 0 : i64, scratch_operands = 0 : i64, tpu.core_type = #tpu.core_type<tc>, window_params = [{transform_indices = @transform_0, window_bounds = array<i64: 8, 784>}, {pipeline_mode = #tpu.pipeline_mode<synchronous>, transform_indices = @transform_1, window_bounds = array<i64: 784, 400>}, {pipeline_mode = #tpu.pipeline_mode<synchronous>, transform_indices = @transform_2, window_bounds = array<i64: 1, 400>}, {pipeline_mode = #tpu.pipeline_mode<synchronous>, transform_indices = @transform_3, window_bounds = array<i64: 400, 40>}, {pipeline_mode = #tpu.pipeline_mode<synchronous>, transform_indices = @transform_4, window_bounds = array<i64: 1, 40>}, {transform_indices = @transform_5, window_bounds = array<i64: 8, 20>}, {pipeline_mode = #tpu.pipeline_mode<synchronous>, transform_indices = @transform_6, window_bounds = array<i64: 20, 400>}, {pipeline_mode = #tpu.pipeline_mode<synchronous>, transform_indices = @transform_7, window_bounds = array<i64: 1, 400>}, {pipeline_mode = #tpu.pipeline_mode<synchronous>, transform_indices = @transform_8, window_bounds = array<i64: 400, 784>}, {pipeline_mode = #tpu.pipeline_mode<synchronous>, transform_indices = @transform_9, window_bounds = array<i64: 1, 784>}, {transform_indices = @transform_10, window_bounds = array<i64: 8, 784>}, {transform_indices = @transform_11, window_bounds = array<i64: 8, 20>}, {transform_indices = @transform_12, window_bounds = array<i64: 8, 20>}]} {
    %c0 = arith.constant 0 : index
    %c0_0 = arith.constant 0 : index
    %0 = vector.load %arg1[%c0, %c0_0] : memref<8x784xbf16, #tpu.memory_space<vmem>>, vector<8x784xbf16>
    %c0_1 = arith.constant 0 : index
    %c0_2 = arith.constant 0 : index
    %1 = vector.load %arg2[%c0_1, %c0_2] : memref<784x400xbf16, #tpu.memory_space<vmem>>, vector<784x400xbf16>
    %cst = arith.constant dense<0.000000e+00> : vector<8x400xf32>
    %2 = tpu.matmul %0, %1, %cst {dimension_numbers = #tpu.dot_dimension_numbers<[1], [0], [0], [1], [0, 0, 1, 1], [], []>} : vector<8x784xbf16>, vector<784x400xbf16>, vector<8x400xf32> -> vector<8x400xf32>
    %c0_3 = arith.constant 0 : index
    %c0_4 = arith.constant 0 : index
    %3 = vector.load %arg3[%c0_3, %c0_4] : memref<1x400xf32, #tpu.memory_space<vmem>>, vector<1x400xf32>
    %4 = vector.broadcast %3 : vector<1x400xf32> to vector<8x400xf32>
    %5 = arith.addf %2, %4 : vector<8x400xf32>
    %cst_5 = arith.constant 0.000000e+00 : f32
    %6 = vector.broadcast %cst_5 : f32 to vector<8x400xf32>
    %7 = arith.maximumf %5, %6 : vector<8x400xf32>
    %8 = arith.truncf %7 : vector<8x400xf32> to vector<8x400xbf16>
    %c0_6 = arith.constant 0 : index
    %c0_7 = arith.constant 0 : index
    %9 = vector.load %arg4[%c0_6, %c0_7] : memref<400x40xbf16, #tpu.memory_space<vmem>>, vector<400x40xbf16>
    %cst_8 = arith.constant dense<0.000000e+00> : vector<8x40xf32>
    %10 = tpu.matmul %8, %9, %cst_8 {dimension_numbers = #tpu.dot_dimension_numbers<[1], [0], [0], [1], [0, 0, 1, 1], [], []>} : vector<8x400xbf16>, vector<400x40xbf16>, vector<8x40xf32> -> vector<8x40xf32>
    %c0_9 = arith.constant 0 : index
    %c0_10 = arith.constant 0 : index
    %11 = vector.load %arg5[%c0_9, %c0_10] : memref<1x40xf32, #tpu.memory_space<vmem>>, vector<1x40xf32>
    %12 = vector.broadcast %11 : vector<1x40xf32> to vector<8x40xf32>
    %13 = arith.addf %10, %12 : vector<8x40xf32>
    %14 = vector.extract_strided_slice %13 {offsets = [0, 0], sizes = [8, 20], strides = [1, 1]} : vector<8x40xf32> to vector<8x20xf32>
    %15 = vector.extract_strided_slice %13 {offsets = [0, 20], sizes = [8, 20], strides = [1, 1]} : vector<8x40xf32> to vector<8x20xf32>
    %cst_11 = arith.constant 5.000000e-01 : f32
    %16 = vector.broadcast %cst_11 : f32 to vector<8x20xf32>
    %17 = arith.mulf %16, %15 : vector<8x20xf32>
    %18 = math.exp %17 : vector<8x20xf32>
    %c0_12 = arith.constant 0 : index
    %c0_13 = arith.constant 0 : index
    %19 = vector.load %arg6[%c0_12, %c0_13] : memref<8x20xf32, #tpu.memory_space<vmem>>, vector<8x20xf32>
    %20 = arith.mulf %19, %18 : vector<8x20xf32>
    %21 = arith.addf %14, %20 : vector<8x20xf32>
    %22 = arith.truncf %21 : vector<8x20xf32> to vector<8x20xbf16>
    %c0_14 = arith.constant 0 : index
    %c0_15 = arith.constant 0 : index
    %23 = vector.load %arg7[%c0_14, %c0_15] : memref<20x400xbf16, #tpu.memory_space<vmem>>, vector<20x400xbf16>
    %cst_16 = arith.constant dense<0.000000e+00> : vector<8x400xf32>
    %24 = tpu.matmul %22, %23, %cst_16 {dimension_numbers = #tpu.dot_dimension_numbers<[1], [0], [0], [1], [0, 0, 1, 1], [], []>} : vector<8x20xbf16>, vector<20x400xbf16>, vector<8x400xf32> -> vector<8x400xf32>
    %c0_17 = arith.constant 0 : index
    %c0_18 = arith.constant 0 : index
    %25 = vector.load %arg8[%c0_17, %c0_18] : memref<1x400xf32, #tpu.memory_space<vmem>>, vector<1x400xf32>
    %26 = vector.broadcast %25 : vector<1x400xf32> to vector<8x400xf32>
    %27 = arith.addf %24, %26 : vector<8x400xf32>
    %cst_19 = arith.constant 0.000000e+00 : f32
    %28 = vector.broadcast %cst_19 : f32 to vector<8x400xf32>
    %29 = arith.maximumf %27, %28 : vector<8x400xf32>
    %30 = arith.truncf %29 : vector<8x400xf32> to vector<8x400xbf16>
    %c0_20 = arith.constant 0 : index
    %c0_21 = arith.constant 0 : index
    %31 = vector.load %arg9[%c0_20, %c0_21] : memref<400x784xbf16, #tpu.memory_space<vmem>>, vector<400x784xbf16>
    %cst_22 = arith.constant dense<0.000000e+00> : vector<8x784xf32>
    %32 = tpu.matmul %30, %31, %cst_22 {dimension_numbers = #tpu.dot_dimension_numbers<[1], [0], [0], [1], [0, 0, 1, 1], [], []>} : vector<8x400xbf16>, vector<400x784xbf16>, vector<8x784xf32> -> vector<8x784xf32>
    %c0_23 = arith.constant 0 : index
    %c0_24 = arith.constant 0 : index
    %33 = vector.load %arg10[%c0_23, %c0_24] : memref<1x784xf32, #tpu.memory_space<vmem>>, vector<1x784xf32>
    %34 = vector.broadcast %33 : vector<1x784xf32> to vector<8x784xf32>
    %35 = arith.addf %32, %34 : vector<8x784xf32>
    %cst_25 = arith.constant 0.000000e+00 : f32
    %36 = vector.broadcast %cst_25 : f32 to vector<8x784xf32>
    %37 = arith.subf %36, %35 : vector<8x784xf32>
    %38 = math.exp %37 : vector<8x784xf32>
    %cst_26 = arith.constant 1.000000e+00 : f32
    %39 = vector.broadcast %cst_26 : f32 to vector<8x784xf32>
    %40 = arith.addf %39, %38 : vector<8x784xf32>
    %41 = tpu.reciprocal %40 {approx = true} : vector<8x784xf32> -> vector<8x784xf32>
    %c0_27 = arith.constant 0 : index
    %c0_28 = arith.constant 0 : index
    %42 = vector.load %arg11[%c0_27, %c0_28] : memref<8x784xf32, #tpu.memory_space<vmem>>, vector<8x784xf32>
    tpu.vector_store %arg11[%c0_27, %c0_28], %41 {strides = array<i32>} : memref<8x784xf32, #tpu.memory_space<vmem>>, vector<8x784xf32>,
    %c0_29 = arith.constant 0 : index
    %c0_30 = arith.constant 0 : index
    %43 = vector.load %arg12[%c0_29, %c0_30] : memref<8x20xf32, #tpu.memory_space<vmem>>, vector<8x20xf32>
    tpu.vector_store %arg12[%c0_29, %c0_30], %14 {strides = array<i32>} : memref<8x20xf32, #tpu.memory_space<vmem>>, vector<8x20xf32>,
    %c0_31 = arith.constant 0 : index
    %c0_32 = arith.constant 0 : index
    %44 = vector.load %arg13[%c0_31, %c0_32] : memref<8x20xf32, #tpu.memory_space<vmem>>, vector<8x20xf32>
    tpu.vector_store %arg13[%c0_31, %c0_32], %15 {strides = array<i32>} : memref<8x20xf32, #tpu.memory_space<vmem>>, vector<8x20xf32>,
    return
  }
  func.func @transform_0(%arg0: i32) -> (i32, i32) {
    %c0_i32 = arith.constant 0 : i32
    %c0_i32_0 = arith.constant 0 : i32
    return %arg0, %c0_i32 : i32, i32
  }
  func.func @transform_1(%arg0: i32) -> (i32, i32) {
    %c0_i32 = arith.constant 0 : i32
    %c0_i32_0 = arith.constant 0 : i32
    %c0_i32_1 = arith.constant 0 : i32
    return %c0_i32, %c0_i32_0 : i32, i32
  }
  func.func @transform_2(%arg0: i32) -> (i32, i32) {
    %c0_i32 = arith.constant 0 : i32
    %c0_i32_0 = arith.constant 0 : i32
    %c0_i32_1 = arith.constant 0 : i32
    return %c0_i32, %c0_i32_0 : i32, i32
  }
  func.func @transform_3(%arg0: i32) -> (i32, i32) {
    %c0_i32 = arith.constant 0 : i32
    %c0_i32_0 = arith.constant 0 : i32
    %c0_i32_1 = arith.constant 0 : i32
    return %c0_i32, %c0_i32_0 : i32, i32
  }
  func.func @transform_4(%arg0: i32) -> (i32, i32) {
    %c0_i32 = arith.constant 0 : i32
    %c0_i32_0 = arith.constant 0 : i32
    %c0_i32_1 = arith.constant 0 : i32
    return %c0_i32, %c0_i32_0 : i32, i32
  }
  func.func @transform_5(%arg0: i32) -> (i32, i32) {
    %c0_i32 = arith.constant 0 : i32
    %c0_i32_0 = arith.constant 0 : i32
    return %arg0, %c0_i32 : i32, i32
  }
  func.func @transform_6(%arg0: i32) -> (i32, i32) {
    %c0_i32 = arith.constant 0 : i32
    %c0_i32_0 = arith.constant 0 : i32
    %c0_i32_1 = arith.constant 0 : i32
    return %c0_i32, %c0_i32_0 : i32, i32
  }
  func.func @transform_7(%arg0: i32) -> (i32, i32) {
    %c0_i32 = arith.constant 0 : i32
    %c0_i32_0 = arith.constant 0 : i32
    %c0_i32_1 = arith.constant 0 : i32
    return %c0_i32, %c0_i32_0 : i32, i32
  }
  func.func @transform_8(%arg0: i32) -> (i32, i32) {
    %c0_i32 = arith.constant 0 : i32
    %c0_i32_0 = arith.constant 0 : i32
    %c0_i32_1 = arith.constant 0 : i32
    return %c0_i32, %c0_i32_0 : i32, i32
  }
  func.func @transform_9(%arg0: i32) -> (i32, i32) {
    %c0_i32 = arith.constant 0 : i32
    %c0_i32_0 = arith.constant 0 : i32
    %c0_i32_1 = arith.constant 0 : i32
    return %c0_i32, %c0_i32_0 : i32, i32
  }
  func.func @transform_10(%arg0: i32) -> (i32, i32) {
    %c0_i32 = arith.constant 0 : i32
    %c0_i32_0 = arith.constant 0 : i32
    return %arg0, %c0_i32 : i32, i32
  }
  func.func @transform_11(%arg0: i32) -> (i32, i32) {
    %c0_i32 = arith.constant 0 : i32
    %c0_i32_0 = arith.constant 0 : i32
    return %arg0, %c0_i32 : i32, i32
  }
  func.func @transform_12(%arg0: i32) -> (i32, i32) {
    %c0_i32 = arith.constant 0 : i32
    %c0_i32_0 = arith.constant 0 : i32
    return %arg0, %c0_i32 : i32, i32
  }
}

</mosaic_0001>

<llo_original>
// kernel: tpu_custom_call.1
$region0: #{tpu_custom_call.1}
  #allocation0 [shape = 'u32[]', space=smem, size = 0x4, offset = 0x4, fixed_abs, tag = 'smem constant byte address 0x4 - core index']
  #allocation1 [shape = 'u32[72,128]{1,0:T(1,128)}', space=vmem, size = 0x9000, scoped, tag = 'internal scratch']
  %s0 = inlined_call_operand.vmem [shape: bf16[8,784], index: 0, kind: input, shape index: {}]
  %s1 = inlined_call_operand.vmem [shape: bf16[784,400], index: 1, kind: input, shape index: {}]
  %s2 = inlined_call_operand.vmem [shape: f32[1,400], index: 2, kind: input, shape index: {}]
  %s3 = inlined_call_operand.vmem [shape: bf16[400,40], index: 3, kind: input, shape index: {}]
  %s4 = inlined_call_operand.vmem [shape: f32[1,40], index: 4, kind: input, shape index: {}]
  %s5 = inlined_call_operand.vmem [shape: f32[8,20], index: 5, kind: input, shape index: {}]
  %s6 = inlined_call_operand.vmem [shape: bf16[20,400], index: 6, kind: input, shape index: {}]
  %s7 = inlined_call_operand.vmem [shape: f32[1,400], index: 7, kind: input, shape index: {}]
  %s8 = inlined_call_operand.vmem [shape: bf16[400,784], index: 8, kind: input, shape index: {}]
  %s9 = inlined_call_operand.vmem [shape: f32[1,784], index: 9, kind: input, shape index: {}]
  %s10 = inlined_call_operand.hbm [shape: f32[8,784], index: 10, kind: output, shape index: {0}]
  %s11 = inlined_call_operand.hbm [shape: f32[8,20], index: 11, kind: output, shape index: {1}]
  %s12 = inlined_call_operand.hbm [shape: f32[8,20], index: 12, kind: output, shape index: {2}]
  %13 = xla_tuple %s10, %s11, %s12
  %s14 = sld [smem:[#allocation0]]
  $region66: #{tpu_custom_call.1} parent=0
    _
  %s16 = ssub.s32 1, %s14
  %s17 = scalar_select 0, %s16, %s14
  $region1: #{tpu_custom_call.1} parent=0
    #allocation2 [shape = 'u8[28672]{0}', space=vmem, size = 0x7000, scoped, tag = 'output window, operand 0, single buffered']
    #allocation3 [shape = 's32[1]{0}', space=sflag, size = 0x4, scoped, tag = 'scoped memory for tpu_custom_call.1']
    #allocation4 [shape = 'u8[4096]{0}', space=vmem, size = 0x1000, scoped, tag = 'output window, operand 1, single buffered']
    #allocation5 [shape = 's32[1]{0}', space=sflag, size = 0x4, scoped, tag = 'scoped memory for tpu_custom_call.1']
    #allocation6 [shape = 'u8[4096]{0}', space=vmem, size = 0x1000, scoped, tag = 'output window, operand 2, single buffered']
    %18 = vsyncpa [#allocation3], 0
    %19 = vsyncpa [#allocation5], 0
    // Predicated region
    $region2: #{tpu_custom_call.1} parent=1 // pred_check
      _
    $region3: #{tpu_custom_call.1} parent=1 // pred_check_branch
      %21 = sbr.rel (0) target = $region5
    $region4: #{tpu_custom_call.1} parent=1 // pred_region
      _
    $region5: #{tpu_custom_call.1} parent=1 // pred_fallthru
      _
    // Predicated region
    $region6: #{tpu_custom_call.1} parent=1 // pred_check
      _
    $region7: #{tpu_custom_call.1} parent=1 // pred_check_branch
      %23 = sbr.rel (0) target = $region9
    $region8: #{tpu_custom_call.1} parent=1 // pred_region
      _
    $region9: #{tpu_custom_call.1} parent=1 // pred_fallthru
      _
    // Predicated region
    $region10: #{tpu_custom_call.1} parent=1 // pred_check
      _
    $region11: #{tpu_custom_call.1} parent=1 // pred_check_branch
      %25 = sbr.rel (0) target = $region13
    $region12: #{tpu_custom_call.1} parent=1 // pred_region
      _
    $region13: #{tpu_custom_call.1} parent=1 // pred_fallthru
      _
    // Predicated region
    $region14: #{tpu_custom_call.1} parent=1 // pred_check
      _
    $region15: #{tpu_custom_call.1} parent=1 // pred_check_branch
      %27 = sbr.rel (0) target = $region17
    $region16: #{tpu_custom_call.1} parent=1 // pred_region
      _
    $region17: #{tpu_custom_call.1} parent=1 // pred_fallthru
      _
    // Predicated region
    $region18: #{tpu_custom_call.1} parent=1 // pred_check
      _
    $region19: #{tpu_custom_call.1} parent=1 // pred_check_branch
      %29 = sbr.rel (0) target = $region21
    $region20: #{tpu_custom_call.1} parent=1 // pred_region
      _
    $region21: #{tpu_custom_call.1} parent=1 // pred_fallthru
      _
    // Predicated region
    $region22: #{tpu_custom_call.1} parent=1 // pred_check
      _
    $region23: #{tpu_custom_call.1} parent=1 // pred_check_branch
      %31 = sbr.rel (0) target = $region25
    $region24: #{tpu_custom_call.1} parent=1 // pred_region
      _
    $region25: #{tpu_custom_call.1} parent=1 // pred_fallthru
      _
    // Predicated region
    $region26: #{tpu_custom_call.1} parent=1 // pred_check
      _
    $region27: #{tpu_custom_call.1} parent=1 // pred_check_branch
      %33 = sbr.rel (0) target = $region29
    $region28: #{tpu_custom_call.1} parent=1 // pred_region
      _
    $region29: #{tpu_custom_call.1} parent=1 // pred_fallthru
      _
    // Predicated region
    $region30: #{tpu_custom_call.1} parent=1 // pred_check
      _
    $region31: #{tpu_custom_call.1} parent=1 // pred_check_branch
      %35 = sbr.rel (0) target = $region33
    $region32: #{tpu_custom_call.1} parent=1 // pred_region
      _
    $region33: #{tpu_custom_call.1} parent=1 // pred_fallthru
      _
    // Predicated region
    $region34: #{tpu_custom_call.1} parent=1 // pred_check
      _
    $region35: #{tpu_custom_call.1} parent=1 // pred_check_branch
      %37 = sbr.rel (0) target = $region37
    $region36: #{tpu_custom_call.1} parent=1 // pred_region
      _
    $region37: #{tpu_custom_call.1} parent=1 // pred_fallthru
      _
    // Predicated region
    $region38: #{tpu_custom_call.1} parent=1 // pred_check
      _
    $region39: #{tpu_custom_call.1} parent=1 // pred_check_branch
      %39 = sbr.rel (0) target = $region41
    $region40: #{tpu_custom_call.1} parent=1 // pred_region
      _
    $region41: #{tpu_custom_call.1} parent=1 // pred_fallthru
      _
    %v41 = vld [vmem:[%s0] sm:$0xff]
    %v42 = vld [vmem:[%s0 + $0x8] sm:$0xff]
    %v43 = vld [vmem:[%s0 + $0x10] sm:$0xff]
    %v44 = vld [vmem:[%s0 + $0x18] sm:$0xf]
    %v45 = vld [vmem:[%s1] sm:$0xff]
    %v46 = vld [vmem:[%s1 + $0x8] sm:$0xff]
    %v47 = vld [vmem:[%s1 + $0x10] sm:$0xff]
    %v48 = vld [vmem:[%s1 + $0x18] sm:$0xff]
    %v49 = vld [vmem:[%s1 + $0x20] sm:$0xff]
    %v50 = vld [vmem:[%s1 + $0x28] sm:$0xff]
    %v51 = vld [vmem:[%s1 + $0x30] sm:$0xff]
    %v52 = vld [vmem:[%s1 + $0x38] sm:$0xff]
    %v53 = vld [vmem:[%s1 + $0x40] sm:$0xff]
    %v54 = vld [vmem:[%s1 + $0x48] sm:$0xff]
    %v55 = vld [vmem:[%s1 + $0x50] sm:$0xff]
    %v56 = vld [vmem:[%s1 + $0x58] sm:$0xff]
    %v57 = vld [vmem:[%s1 + $0x60] sm:$0xff]
    %v58 = vld [vmem:[%s1 + $0x68] sm:$0xff]
    %v59 = vld [vmem:[%s1 + $0x70] sm:$0xff]
    %v60 = vld [vmem:[%s1 + $0x78] sm:$0xff]
    %v61 = vld [vmem:[%s1 + $0x80] sm:$0xff]
    %v62 = vld [vmem:[%s1 + $0x88] sm:$0xff]
    %v63 = vld [vmem:[%s1 + $0x90] sm:$0xff]
    %v64 = vld [vmem:[%s1 + $0x98] sm:$0xff]
    %v65 = vld [vmem:[%s1 + $0xa0] sm:$0xff]
    %v66 = vld [vmem:[%s1 + $0xa8] sm:$0xff]
    %v67 = vld [vmem:[%s1 + $0xb0] sm:$0xff]
    %v68 = vld [vmem:[%s1 + $0xb8] sm:$0xff]
    %v69 = vld [vmem:[%s1 + $0xc0] sm:$0xff]
    %v70 = vld [vmem:[%s1 + $0xc8] sm:$0xff]
    %v71 = vld [vmem:[%s1 + $0xd0] sm:$0xff]
    %v72 = vld [vmem:[%s1 + $0xd8] sm:$0xff]
    %v73 = vld [vmem:[%s1 + $0xe0] sm:$0xff]
    %v74 = vld [vmem:[%s1 + $0xe8] sm:$0xff]
    %v75 = vld [vmem:[%s1 + $0xf0] sm:$0xff]
    %v76 = vld [vmem:[%s1 + $0xf8] sm:$0xff]
    %v77 = vld [vmem:[%s1 + $0x100] sm:$0xff]
    %v78 = vld [vmem:[%s1 + $0x108] sm:$0xff]
    %v79 = vld [vmem:[%s1 + $0x110] sm:$0xff]
    %v80 = vld [vmem:[%s1 + $0x118] sm:$0xff]
    %v81 = vld [vmem:[%s1 + $0x120] sm:$0xff]
    %v82 = vld [vmem:[%s1 + $0x128] sm:$0xff]
    %v83 = vld [vmem:[%s1 + $0x130] sm:$0xff]
    %v84 = vld [vmem:[%s1 + $0x138] sm:$0xff]
    %v85 = vld [vmem:[%s1 + $0x140] sm:$0xff]
    %v86 = vld [vmem:[%s1 + $0x148] sm:$0xff]
    %v87 = vld [vmem:[%s1 + $0x150] sm:$0xff]
    %v88 = vld [vmem:[%s1 + $0x158] sm:$0xff]
    %v89 = vld [vmem:[%s1 + $0x160] sm:$0xff]
    %v90 = vld [vmem:[%s1 + $0x168] sm:$0xff]
    %v91 = vld [vmem:[%s1 + $0x170] sm:$0xff]
    %v92 = vld [vmem:[%s1 + $0x178] sm:$0xff]
    %v93 = vld [vmem:[%s1 + $0x180] sm:$0xff]
    %v94 = vld [vmem:[%s1 + $0x188] sm:$0xff]
    %v95 = vld [vmem:[%s1 + $0x190] sm:$0xff]
    %v96 = vld [vmem:[%s1 + $0x198] sm:$0xff]
    %v97 = vld [vmem:[%s1 + $0x1a0] sm:$0xff]
    %v98 = vld [vmem:[%s1 + $0x1a8] sm:$0xff]
    %v99 = vld [vmem:[%s1 + $0x1b0] sm:$0xff]
    %v100 = vld [vmem:[%s1 + $0x1b8] sm:$0xff]
    %v101 = vld [vmem:[%s1 + $0x1c0] sm:$0xff]
    %v102 = vld [vmem:[%s1 + $0x1c8] sm:$0xff]
    %v103 = vld [vmem:[%s1 + $0x1d0] sm:$0xff]
    %v104 = vld [vmem:[%s1 + $0x1d8] sm:$0xff]
    %v105 = vld [vmem:[%s1 + $0x1e0] sm:$0xff]
    %v106 = vld [vmem:[%s1 + $0x1e8] sm:$0xff]
    %v107 = vld [vmem:[%s1 + $0x1f0] sm:$0xff]
    %v108 = vld [vmem:[%s1 + $0x1f8] sm:$0xff]
    %v109 = vld [vmem:[%s1 + $0x200] sm:$0xff]
    %v110 = vld [vmem:[%s1 + $0x208] sm:$0xff]
    %v111 = vld [vmem:[%s1 + $0x210] sm:$0xff]
    %v112 = vld [vmem:[%s1 + $0x218] sm:$0xff]
    %v113 = vld [vmem:[%s1 + $0x220] sm:$0xff]
    %v114 = vld [vmem:[%s1 + $0x228] sm:$0xff]
    %v115 = vld [vmem:[%s1 + $0x230] sm:$0xff]
    %v116 = vld [vmem:[%s1 + $0x238] sm:$0xff]
    %v117 = vld [vmem:[%s1 + $0x240] sm:$0xff]
    %v118 = vld [vmem:[%s1 + $0x248] sm:$0xff]
    %v119 = vld [vmem:[%s1 + $0x250] sm:$0xff]
    %v120 = vld [vmem:[%s1 + $0x258] sm:$0xff]
    %v121 = vld [vmem:[%s1 + $0x260] sm:$0xff]
    %v122 = vld [vmem:[%s1 + $0x268] sm:$0xff]
    %v123 = vld [vmem:[%s1 + $0x270] sm:$0xff]
    %v124 = vld [vmem:[%s1 + $0x278] sm:$0xff]
    %v125 = vld [vmem:[%s1 + $0x280] sm:$0xff]
    %v126 = vld [vmem:[%s1 + $0x288] sm:$0xff]
    %v127 = vld [vmem:[%s1 + $0x290] sm:$0xff]
    %v128 = vld [vmem:[%s1 + $0x298] sm:$0xff]
    %v129 = vld [vmem:[%s1 + $0x2a0] sm:$0xff]
    %v130 = vld [vmem:[%s1 + $0x2a8] sm:$0xff]
    %v131 = vld [vmem:[%s1 + $0x2b0] sm:$0xff]
    %v132 = vld [vmem:[%s1 + $0x2b8] sm:$0xff]
    %v133 = vld [vmem:[%s1 + $0x2c0] sm:$0xff]
    %v134 = vld [vmem:[%s1 + $0x2c8] sm:$0xff]
    %v135 = vld [vmem:[%s1 + $0x2d0] sm:$0xff]
    %v136 = vld [vmem:[%s1 + $0x2d8] sm:$0xff]
    %v137 = vld [vmem:[%s1 + $0x2e0] sm:$0xff]
    %v138 = vld [vmem:[%s1 + $0x2e8] sm:$0xff]
    %v139 = vld [vmem:[%s1 + $0x2f0] sm:$0xff]
    %v140 = vld [vmem:[%s1 + $0x2f8] sm:$0xff]
    %v141 = vld [vmem:[%s1 + $0x300] sm:$0xff]
    %v142 = vld [vmem:[%s1 + $0x308] sm:$0xff]
    %v143 = vld [vmem:[%s1 + $0x310] sm:$0xff]
    %v144 = vld [vmem:[%s1 + $0x318] sm:$0xff]
    %v145 = vld [vmem:[%s1 + $0x320] sm:$0xff]
    %v146 = vld [vmem:[%s1 + $0x328] sm:$0xff]
    %v147 = vld [vmem:[%s1 + $0x330] sm:$0xff]
    %v148 = vld [vmem:[%s1 + $0x338] sm:$0xff]
    %v149 = vld [vmem:[%s1 + $0x340] sm:$0xff]
    %v150 = vld [vmem:[%s1 + $0x348] sm:$0xff]
    %v151 = vld [vmem:[%s1 + $0x350] sm:$0xff]
    %v152 = vld [vmem:[%s1 + $0x358] sm:$0xff]
    %v153 = vld [vmem:[%s1 + $0x360] sm:$0xff]
    %v154 = vld [vmem:[%s1 + $0x368] sm:$0xff]
    %v155 = vld [vmem:[%s1 + $0x370] sm:$0xff]
    %v156 = vld [vmem:[%s1 + $0x378] sm:$0xff]
    %v157 = vld [vmem:[%s1 + $0x380] sm:$0xff]
    %v158 = vld [vmem:[%s1 + $0x388] sm:$0xff]
    %v159 = vld [vmem:[%s1 + $0x390] sm:$0xff]
    %v160 = vld [vmem:[%s1 + $0x398] sm:$0xff]
    %v161 = vld [vmem:[%s1 + $0x3a0] sm:$0xff]
    %v162 = vld [vmem:[%s1 + $0x3a8] sm:$0xff]
    %v163 = vld [vmem:[%s1 + $0x3b0] sm:$0xff]
    %v164 = vld [vmem:[%s1 + $0x3b8] sm:$0xff]
    %v165 = vld [vmem:[%s1 + $0x3c0] sm:$0xff]
    %v166 = vld [vmem:[%s1 + $0x3c8] sm:$0xff]
    %v167 = vld [vmem:[%s1 + $0x3d0] sm:$0xff]
    %v168 = vld [vmem:[%s1 + $0x3d8] sm:$0xff]
    %v169 = vld [vmem:[%s1 + $0x3e0] sm:$0xff]
    %v170 = vld [vmem:[%s1 + $0x3e8] sm:$0xff]
    %v171 = vld [vmem:[%s1 + $0x3f0] sm:$0xff]
    %v172 = vld [vmem:[%s1 + $0x3f8] sm:$0xff]
    %v173 = vld [vmem:[%s1 + $0x400] sm:$0xff]
    %v174 = vld [vmem:[%s1 + $0x408] sm:$0xff]
    %v175 = vld [vmem:[%s1 + $0x410] sm:$0xff]
    %v176 = vld [vmem:[%s1 + $0x418] sm:$0xff]
    %v177 = vld [vmem:[%s1 + $0x420] sm:$0xff]
    %v178 = vld [vmem:[%s1 + $0x428] sm:$0xff]
    %v179 = vld [vmem:[%s1 + $0x430] sm:$0xff]
    %v180 = vld [vmem:[%s1 + $0x438] sm:$0xff]
    %v181 = vld [vmem:[%s1 + $0x440] sm:$0xff]
    %v182 = vld [vmem:[%s1 + $0x448] sm:$0xff]
    %v183 = vld [vmem:[%s1 + $0x450] sm:$0xff]
    %v184 = vld [vmem:[%s1 + $0x458] sm:$0xff]
    %v185 = vld [vmem:[%s1 + $0x460] sm:$0xff]
    %v186 = vld [vmem:[%s1 + $0x468] sm:$0xff]
    %v187 = vld [vmem:[%s1 + $0x470] sm:$0xff]
    %v188 = vld [vmem:[%s1 + $0x478] sm:$0xff]
    %v189 = vld [vmem:[%s1 + $0x480] sm:$0xff]
    %v190 = vld [vmem:[%s1 + $0x488] sm:$0xff]
    %v191 = vld [vmem:[%s1 + $0x490] sm:$0xff]
    %v192 = vld [vmem:[%s1 + $0x498] sm:$0xff]
    %v193 = vld [vmem:[%s1 + $0x4a0] sm:$0xff]
    %v194 = vld [vmem:[%s1 + $0x4a8] sm:$0xff]
    %v195 = vld [vmem:[%s1 + $0x4b0] sm:$0xff]
    %v196 = vld [vmem:[%s1 + $0x4b8] sm:$0xff]
    %v197 = vld [vmem:[%s1 + $0x4c0] sm:$0xff]
    %v198 = vld [vmem:[%s1 + $0x4c8] sm:$0xff]
    %v199 = vld [vmem:[%s1 + $0x4d0] sm:$0xff]
    %v200 = vld [vmem:[%s1 + $0x4d8] sm:$0xff]
    %v201 = vld [vmem:[%s1 + $0x4e0] sm:$0xff]
    %v202 = vld [vmem:[%s1 + $0x4e8] sm:$0xff]
    %v203 = vld [vmem:[%s1 + $0x4f0] sm:$0xff]
    %v204 = vld [vmem:[%s1 + $0x4f8] sm:$0xff]
    %v205 = vld [vmem:[%s1 + $0x500] sm:$0xff]
    %v206 = vld [vmem:[%s1 + $0x508] sm:$0xff]
    %v207 = vld [vmem:[%s1 + $0x510] sm:$0xff]
    %v208 = vld [vmem:[%s1 + $0x518] sm:$0xff]
    %v209 = vld [vmem:[%s1 + $0x520] sm:$0xff]
    %v210 = vld [vmem:[%s1 + $0x528] sm:$0xff]
    %v211 = vld [vmem:[%s1 + $0x530] sm:$0xff]
    %v212 = vld [vmem:[%s1 + $0x538] sm:$0xff]
    %v213 = vld [vmem:[%s1 + $0x540] sm:$0xff]
    %v214 = vld [vmem:[%s1 + $0x548] sm:$0xff]
    %v215 = vld [vmem:[%s1 + $0x550] sm:$0xff]
    %v216 = vld [vmem:[%s1 + $0x558] sm:$0xff]
    %v217 = vld [vmem:[%s1 + $0x560] sm:$0xff]
    %v218 = vld [vmem:[%s1 + $0x568] sm:$0xff]
    %v219 = vld [vmem:[%s1 + $0x570] sm:$0xff]
    %v220 = vld [vmem:[%s1 + $0x578] sm:$0xff]
    %v221 = vld [vmem:[%s1 + $0x580] sm:$0xff]
    %v222 = vld [vmem:[%s1 + $0x588] sm:$0xff]
    %v223 = vld [vmem:[%s1 + $0x590] sm:$0xff]
    %v224 = vld [vmem:[%s1 + $0x598] sm:$0xff]
    %v225 = vld [vmem:[%s1 + $0x5a0] sm:$0xff]
    %v226 = vld [vmem:[%s1 + $0x5a8] sm:$0xff]
    %v227 = vld [vmem:[%s1 + $0x5b0] sm:$0xff]
    %v228 = vld [vmem:[%s1 + $0x5b8] sm:$0xff]
    %v229 = vld [vmem:[%s1 + $0x5c0] sm:$0xff]
    %v230 = vld [vmem:[%s1 + $0x5c8] sm:$0xff]
    %v231 = vld [vmem:[%s1 + $0x5d0] sm:$0xff]
    %v232 = vld [vmem:[%s1 + $0x5d8] sm:$0xff]
    %v233 = vld [vmem:[%s1 + $0x5e0] sm:$0xff]
    %v234 = vld [vmem:[%s1 + $0x5e8] sm:$0xff]
    %v235 = vld [vmem:[%s1 + $0x5f0] sm:$0xff]
    %v236 = vld [vmem:[%s1 + $0x5f8] sm:$0xff]
    %v237 = vld [vmem:[%s1 + $0x600] sm:$0xff]
    %v238 = vld [vmem:[%s1 + $0x608] sm:$0xff]
    %v239 = vld [vmem:[%s1 + $0x610] sm:$0xff]
    %v240 = vld [vmem:[%s1 + $0x618] sm:$0xff]
    %v241 = vld [vmem:[%s2] sm:$0xf]
    %v243 = vperm.slane %v241, 0
    %v244 = vperm.slane %v241, 1
    %v245 = vperm.slane %v241, 2
    %v246 = vperm.slane %v241, 3
    %v255 = vunpack.c.l.b16 %v41
    %v256 = vunpack.c.h.b16 %v41
    %v257 = vunpack.c.l.b16 %v42
    %v258 = vunpack.c.h.b16 %v42
    %v259 = vunpack.c.l.b16 %v43
    %v260 = vunpack.c.h.b16 %v43
    %v261 = vunpack.c.l.b16 %v44
    %v262 = vpack.c.b16 %v255, %v255
    %v263 = vpack.c.b16 %v256, %v256
    %v264 = vpack.c.b16 %v257, %v257
    %v265 = vpack.c.b16 %v258, %v258
    %v266 = vpack.c.b16 %v259, %v259
    %v267 = vpack.c.b16 %v260, %v260
    %v268 = vpack.c.b16 %v261, %v261
    %v471 = vunpack.c.l.b16 %v45
    %v472 = vunpack.c.h.b16 %v45
    %v473 = vunpack.c.l.b16 %v46
    %v474 = vunpack.c.h.b16 %v46
    %v475 = vunpack.c.l.b16 %v47
    %v476 = vunpack.c.h.b16 %v47
    %v477 = vunpack.c.l.b16 %v48
    %v478 = vunpack.c.h.b16 %v48
    %v479 = vunpack.c.l.b16 %v49
    %v480 = vunpack.c.h.b16 %v49
    %v481 = vunpack.c.l.b16 %v50
    %v482 = vunpack.c.h.b16 %v50
    %v483 = vunpack.c.l.b16 %v51
    %v484 = vunpack.c.h.b16 %v51
    %v485 = vunpack.c.l.b16 %v52
    %v486 = vunpack.c.h.b16 %v52
    %v487 = vunpack.c.l.b16 %v53
    %v488 = vunpack.c.h.b16 %v53
    %v489 = vunpack.c.l.b16 %v54
    %v490 = vunpack.c.h.b16 %v54
    %v491 = vunpack.c.l.b16 %v55
    %v492 = vunpack.c.h.b16 %v55
    %v493 = vunpack.c.l.b16 %v56
    %v494 = vunpack.c.h.b16 %v56
    %v495 = vunpack.c.l.b16 %v57
    %v496 = vunpack.c.h.b16 %v57
    %v497 = vunpack.c.l.b16 %v58
    %v498 = vunpack.c.h.b16 %v58
    %v499 = vunpack.c.l.b16 %v59
    %v500 = vunpack.c.h.b16 %v59
    %v501 = vunpack.c.l.b16 %v60
    %v502 = vunpack.c.h.b16 %v60
    %v503 = vunpack.c.l.b16 %v61
    %v504 = vunpack.c.h.b16 %v61
    %v505 = vunpack.c.l.b16 %v62
    %v506 = vunpack.c.h.b16 %v62
    %v507 = vunpack.c.l.b16 %v63
    %v508 = vunpack.c.h.b16 %v63
    %v509 = vunpack.c.l.b16 %v64
    %v510 = vunpack.c.h.b16 %v64
    %v511 = vunpack.c.l.b16 %v65
    %v512 = vunpack.c.h.b16 %v65
    %v513 = vunpack.c.l.b16 %v66
    %v514 = vunpack.c.h.b16 %v66
    %v515 = vunpack.c.l.b16 %v67
    %v516 = vunpack.c.h.b16 %v67
    %v517 = vunpack.c.l.b16 %v68
    %v518 = vunpack.c.h.b16 %v68
    %v519 = vunpack.c.l.b16 %v69
    %v520 = vunpack.c.h.b16 %v69
    %v521 = vunpack.c.l.b16 %v70
    %v522 = vunpack.c.h.b16 %v70
    %v523 = vunpack.c.l.b16 %v71
    %v524 = vunpack.c.h.b16 %v71
    %v525 = vunpack.c.l.b16 %v72
    %v526 = vunpack.c.h.b16 %v72
    %v527 = vunpack.c.l.b16 %v73
    %v528 = vunpack.c.h.b16 %v73
    %v529 = vunpack.c.l.b16 %v74
    %v530 = vunpack.c.h.b16 %v74
    %v531 = vunpack.c.l.b16 %v75
    %v532 = vunpack.c.h.b16 %v75
    %v533 = vunpack.c.l.b16 %v76
    %v534 = vunpack.c.h.b16 %v76
    %v535 = vunpack.c.l.b16 %v77
    %v536 = vunpack.c.h.b16 %v77
    %v537 = vunpack.c.l.b16 %v78
    %v538 = vunpack.c.h.b16 %v78
    %v539 = vunpack.c.l.b16 %v79
    %v540 = vunpack.c.h.b16 %v79
    %v541 = vunpack.c.l.b16 %v80
    %v542 = vunpack.c.h.b16 %v80
    %v543 = vunpack.c.l.b16 %v81
    %v544 = vunpack.c.h.b16 %v81
    %v545 = vunpack.c.l.b16 %v82
    %v546 = vunpack.c.h.b16 %v82
    %v547 = vunpack.c.l.b16 %v83
    %v548 = vunpack.c.h.b16 %v83
    %v549 = vunpack.c.l.b16 %v84
    %v550 = vunpack.c.h.b16 %v84
    %v551 = vunpack.c.l.b16 %v85
    %v552 = vunpack.c.h.b16 %v85
    %v553 = vunpack.c.l.b16 %v86
    %v554 = vunpack.c.h.b16 %v86
    %v555 = vunpack.c.l.b16 %v87
    %v556 = vunpack.c.h.b16 %v87
    %v557 = vunpack.c.l.b16 %v88
    %v558 = vunpack.c.h.b16 %v88
    %v559 = vunpack.c.l.b16 %v89
    %v560 = vunpack.c.h.b16 %v89
    %v561 = vunpack.c.l.b16 %v90
    %v562 = vunpack.c.h.b16 %v90
    %v563 = vunpack.c.l.b16 %v91
    %v564 = vunpack.c.h.b16 %v91
    %v565 = vunpack.c.l.b16 %v92
    %v566 = vunpack.c.h.b16 %v92
    %v567 = vunpack.c.l.b16 %v93
    %v568 = vunpack.c.h.b16 %v93
    %v569 = vunpack.c.l.b16 %v94
    %v570 = vunpack.c.h.b16 %v94
    %v571 = vunpack.c.l.b16 %v95
    %v572 = vunpack.c.h.b16 %v95
    %v573 = vunpack.c.l.b16 %v96
    %v574 = vunpack.c.h.b16 %v96
    %v575 = vunpack.c.l.b16 %v97
    %v576 = vunpack.c.h.b16 %v97
    %v577 = vunpack.c.l.b16 %v98
    %v578 = vunpack.c.h.b16 %v98
    %v579 = vunpack.c.l.b16 %v99
    %v580 = vunpack.c.h.b16 %v99
    %v581 = vunpack.c.l.b16 %v100
    %v582 = vunpack.c.h.b16 %v100
    %v583 = vunpack.c.l.b16 %v101
    %v584 = vunpack.c.h.b16 %v101
    %v585 = vunpack.c.l.b16 %v102
    %v586 = vunpack.c.h.b16 %v102
    %v587 = vunpack.c.l.b16 %v103
    %v588 = vunpack.c.h.b16 %v103
    %v589 = vunpack.c.l.b16 %v104
    %v590 = vunpack.c.h.b16 %v104
    %v591 = vunpack.c.l.b16 %v105
    %v592 = vunpack.c.h.b16 %v105
    %v593 = vunpack.c.l.b16 %v106
    %v594 = vunpack.c.h.b16 %v106
    %v595 = vunpack.c.l.b16 %v107
    %v596 = vunpack.c.h.b16 %v107
    %v597 = vunpack.c.l.b16 %v108
    %v598 = vunpack.c.h.b16 %v108
    %v599 = vunpack.c.l.b16 %v109
    %v600 = vunpack.c.h.b16 %v109
    %v601 = vunpack.c.l.b16 %v110
    %v602 = vunpack.c.h.b16 %v110
    %v603 = vunpack.c.l.b16 %v111
    %v604 = vunpack.c.h.b16 %v111
    %v605 = vunpack.c.l.b16 %v112
    %v606 = vunpack.c.h.b16 %v112
    %v607 = vunpack.c.l.b16 %v113
    %v608 = vunpack.c.h.b16 %v113
    %v609 = vunpack.c.l.b16 %v114
    %v610 = vunpack.c.h.b16 %v114
    %v611 = vunpack.c.l.b16 %v115
    %v612 = vunpack.c.h.b16 %v115
    %v613 = vunpack.c.l.b16 %v116
    %v614 = vunpack.c.h.b16 %v116
    %v615 = vunpack.c.l.b16 %v117
    %v616 = vunpack.c.h.b16 %v117
    %v617 = vunpack.c.l.b16 %v118
    %v618 = vunpack.c.h.b16 %v118
    %v619 = vunpack.c.l.b16 %v119
    %v620 = vunpack.c.h.b16 %v119
    %v621 = vunpack.c.l.b16 %v120
    %v622 = vunpack.c.h.b16 %v120
    %v623 = vunpack.c.l.b16 %v121
    %v624 = vunpack.c.h.b16 %v121
    %v625 = vunpack.c.l.b16 %v122
    %v626 = vunpack.c.h.b16 %v122
    %v627 = vunpack.c.l.b16 %v123
    %v628 = vunpack.c.h.b16 %v123
    %v629 = vunpack.c.l.b16 %v124
    %v630 = vunpack.c.h.b16 %v124
    %v631 = vunpack.c.l.b16 %v125
    %v632 = vunpack.c.h.b16 %v125
    %v633 = vunpack.c.l.b16 %v126
    %v634 = vunpack.c.h.b16 %v126
    %v635 = vunpack.c.l.b16 %v127
    %v636 = vunpack.c.h.b16 %v127
    %v637 = vunpack.c.l.b16 %v128
    %v638 = vunpack.c.h.b16 %v128
    %v639 = vunpack.c.l.b16 %v129
    %v640 = vunpack.c.h.b16 %v129
    %v641 = vunpack.c.l.b16 %v130
    %v642 = vunpack.c.h.b16 %v130
    %v643 = vunpack.c.l.b16 %v131
    %v644 = vunpack.c.h.b16 %v131
    %v645 = vunpack.c.l.b16 %v132
    %v646 = vunpack.c.h.b16 %v132
    %v647 = vunpack.c.l.b16 %v133
    %v648 = vunpack.c.h.b16 %v133
    %v649 = vunpack.c.l.b16 %v134
    %v650 = vunpack.c.h.b16 %v134
    %v651 = vunpack.c.l.b16 %v135
    %v652 = vunpack.c.h.b16 %v135
    %v653 = vunpack.c.l.b16 %v136
    %v654 = vunpack.c.h.b16 %v136
    %v655 = vunpack.c.l.b16 %v137
    %v656 = vunpack.c.h.b16 %v137
    %v657 = vunpack.c.l.b16 %v138
    %v658 = vunpack.c.h.b16 %v138
    %v659 = vunpack.c.l.b16 %v139
    %v660 = vunpack.c.h.b16 %v139
    %v661 = vunpack.c.l.b16 %v140
    %v662 = vunpack.c.h.b16 %v140
    %v663 = vunpack.c.l.b16 %v141
    %v664 = vunpack.c.h.b16 %v141
    %v665 = vunpack.c.l.b16 %v142
    %v666 = vunpack.c.h.b16 %v142
    %v667 = vunpack.c.l.b16 %v143
    %v668 = vunpack.c.h.b16 %v143
    %v669 = vunpack.c.l.b16 %v144
    %v670 = vunpack.c.h.b16 %v144
    %v671 = vunpack.c.l.b16 %v145
    %v672 = vunpack.c.h.b16 %v145
    %v673 = vunpack.c.l.b16 %v146
    %v674 = vunpack.c.h.b16 %v146
    %v675 = vunpack.c.l.b16 %v147
    %v676 = vunpack.c.h.b16 %v147
    %v677 = vunpack.c.l.b16 %v148
    %v678 = vunpack.c.h.b16 %v148
    %v679 = vunpack.c.l.b16 %v149
    %v680 = vunpack.c.h.b16 %v149
    %v681 = vunpack.c.l.b16 %v150
    %v682 = vunpack.c.h.b16 %v150
    %v683 = vunpack.c.l.b16 %v151
    %v684 = vunpack.c.h.b16 %v151
    %v685 = vunpack.c.l.b16 %v152
    %v686 = vunpack.c.h.b16 %v152
    %v687 = vunpack.c.l.b16 %v153
    %v688 = vunpack.c.h.b16 %v153
    %v689 = vunpack.c.l.b16 %v154
    %v690 = vunpack.c.h.b16 %v154
    %v691 = vunpack.c.l.b16 %v155
    %v692 = vunpack.c.h.b16 %v155
    %v693 = vunpack.c.l.b16 %v156
    %v694 = vunpack.c.h.b16 %v156
    %v695 = vunpack.c.l.b16 %v157
    %v696 = vunpack.c.h.b16 %v157
    %v697 = vunpack.c.l.b16 %v158
    %v698 = vunpack.c.h.b16 %v158
    %v699 = vunpack.c.l.b16 %v159
    %v700 = vunpack.c.h.b16 %v159
    %v701 = vunpack.c.l.b16 %v160
    %v702 = vunpack.c.h.b16 %v160
    %v703 = vunpack.c.l.b16 %v161
    %v704 = vunpack.c.h.b16 %v161
    %v705 = vunpack.c.l.b16 %v162
    %v706 = vunpack.c.h.b16 %v162
    %v707 = vunpack.c.l.b16 %v163
    %v708 = vunpack.c.h.b16 %v163
    %v709 = vunpack.c.l.b16 %v164
    %v710 = vunpack.c.h.b16 %v164
    %v711 = vunpack.c.l.b16 %v165
    %v712 = vunpack.c.h.b16 %v165
    %v713 = vunpack.c.l.b16 %v166
    %v714 = vunpack.c.h.b16 %v166
    %v715 = vunpack.c.l.b16 %v167
    %v716 = vunpack.c.h.b16 %v167
    %v717 = vunpack.c.l.b16 %v168
    %v718 = vunpack.c.h.b16 %v168
    %v719 = vunpack.c.l.b16 %v169
    %v720 = vunpack.c.h.b16 %v169
    %v721 = vunpack.c.l.b16 %v170
    %v722 = vunpack.c.h.b16 %v170
    %v723 = vunpack.c.l.b16 %v171
    %v724 = vunpack.c.h.b16 %v171
    %v725 = vunpack.c.l.b16 %v172
    %v726 = vunpack.c.h.b16 %v172
    %v727 = vunpack.c.l.b16 %v173
    %v728 = vunpack.c.h.b16 %v173
    %v729 = vunpack.c.l.b16 %v174
    %v730 = vunpack.c.h.b16 %v174
    %v731 = vunpack.c.l.b16 %v175
    %v732 = vunpack.c.h.b16 %v175
    %v733 = vunpack.c.l.b16 %v176
    %v734 = vunpack.c.h.b16 %v176
    %v735 = vunpack.c.l.b16 %v177
    %v736 = vunpack.c.h.b16 %v177
    %v737 = vunpack.c.l.b16 %v178
    %v738 = vunpack.c.h.b16 %v178
    %v739 = vunpack.c.l.b16 %v179
    %v740 = vunpack.c.h.b16 %v179
    %v741 = vunpack.c.l.b16 %v180
    %v742 = vunpack.c.h.b16 %v180
    %v743 = vunpack.c.l.b16 %v181
    %v744 = vunpack.c.h.b16 %v181
    %v745 = vunpack.c.l.b16 %v182
    %v746 = vunpack.c.h.b16 %v182
    %v747 = vunpack.c.l.b16 %v183
    %v748 = vunpack.c.h.b16 %v183
    %v749 = vunpack.c.l.b16 %v184
    %v750 = vunpack.c.h.b16 %v184
    %v751 = vunpack.c.l.b16 %v185
    %v752 = vunpack.c.h.b16 %v185
    %v753 = vunpack.c.l.b16 %v186
    %v754 = vunpack.c.h.b16 %v186
    %v755 = vunpack.c.l.b16 %v187
    %v756 = vunpack.c.h.b16 %v187
    %v757 = vunpack.c.l.b16 %v188
    %v758 = vunpack.c.h.b16 %v188
    %v759 = vunpack.c.l.b16 %v189
    %v760 = vunpack.c.h.b16 %v189
    %v761 = vunpack.c.l.b16 %v190
    %v762 = vunpack.c.h.b16 %v190
    %v763 = vunpack.c.l.b16 %v191
    %v764 = vunpack.c.h.b16 %v191
    %v765 = vunpack.c.l.b16 %v192
    %v766 = vunpack.c.h.b16 %v192
    %v767 = vunpack.c.l.b16 %v193
    %v768 = vunpack.c.h.b16 %v193
    %v769 = vunpack.c.l.b16 %v194
    %v770 = vunpack.c.h.b16 %v194
    %v771 = vunpack.c.l.b16 %v195
    %v772 = vunpack.c.h.b16 %v195
    %v773 = vunpack.c.l.b16 %v196
    %v774 = vunpack.c.h.b16 %v196
    %v775 = vunpack.c.l.b16 %v197
    %v776 = vunpack.c.h.b16 %v197
    %v777 = vunpack.c.l.b16 %v198
    %v778 = vunpack.c.h.b16 %v198
    %v779 = vunpack.c.l.b16 %v199
    %v780 = vunpack.c.h.b16 %v199
    %v781 = vunpack.c.l.b16 %v200
    %v782 = vunpack.c.h.b16 %v200
    %v783 = vunpack.c.l.b16 %v201
    %v784 = vunpack.c.h.b16 %v201
    %v785 = vunpack.c.l.b16 %v202
    %v786 = vunpack.c.h.b16 %v202
    %v787 = vunpack.c.l.b16 %v203
    %v788 = vunpack.c.h.b16 %v203
    %v789 = vunpack.c.l.b16 %v204
    %v790 = vunpack.c.h.b16 %v204
    %v791 = vunpack.c.l.b16 %v205
    %v792 = vunpack.c.h.b16 %v205
    %v793 = vunpack.c.l.b16 %v206
    %v794 = vunpack.c.h.b16 %v206
    %v795 = vunpack.c.l.b16 %v207
    %v796 = vunpack.c.h.b16 %v207
    %v797 = vunpack.c.l.b16 %v208
    %v798 = vunpack.c.h.b16 %v208
    %v799 = vunpack.c.l.b16 %v209
    %v800 = vunpack.c.h.b16 %v209
    %v801 = vunpack.c.l.b16 %v210
    %v802 = vunpack.c.h.b16 %v210
    %v803 = vunpack.c.l.b16 %v211
    %v804 = vunpack.c.h.b16 %v211
    %v805 = vunpack.c.l.b16 %v212
    %v806 = vunpack.c.h.b16 %v212
    %v807 = vunpack.c.l.b16 %v213
    %v808 = vunpack.c.h.b16 %v213
    %v809 = vunpack.c.l.b16 %v214
    %v810 = vunpack.c.h.b16 %v214
    %v811 = vunpack.c.l.b16 %v215
    %v812 = vunpack.c.h.b16 %v215
    %v813 = vunpack.c.l.b16 %v216
    %v814 = vunpack.c.h.b16 %v216
    %v815 = vunpack.c.l.b16 %v217
    %v816 = vunpack.c.h.b16 %v217
    %v817 = vunpack.c.l.b16 %v218
    %v818 = vunpack.c.h.b16 %v218
    %v819 = vunpack.c.l.b16 %v219
    %v820 = vunpack.c.h.b16 %v219
    %v821 = vunpack.c.l.b16 %v220
    %v822 = vunpack.c.h.b16 %v220
    %v823 = vunpack.c.l.b16 %v221
    %v824 = vunpack.c.h.b16 %v221
    %v825 = vunpack.c.l.b16 %v222
    %v826 = vunpack.c.h.b16 %v222
    %v827 = vunpack.c.l.b16 %v223
    %v828 = vunpack.c.h.b16 %v223
    %v829 = vunpack.c.l.b16 %v224
    %v830 = vunpack.c.h.b16 %v224
    %v831 = vunpack.c.l.b16 %v225
    %v832 = vunpack.c.h.b16 %v225
    %v833 = vunpack.c.l.b16 %v226
    %v834 = vunpack.c.h.b16 %v226
    %v835 = vunpack.c.l.b16 %v227
    %v836 = vunpack.c.h.b16 %v227
    %v837 = vunpack.c.l.b16 %v228
    %v838 = vunpack.c.h.b16 %v228
    %v839 = vunpack.c.l.b16 %v229
    %v840 = vunpack.c.h.b16 %v229
    %v841 = vunpack.c.l.b16 %v230
    %v842 = vunpack.c.h.b16 %v230
    %v843 = vunpack.c.l.b16 %v231
    %v844 = vunpack.c.h.b16 %v231
    %v845 = vunpack.c.l.b16 %v232
    %v846 = vunpack.c.h.b16 %v232
    %v847 = vunpack.c.l.b16 %v233
    %v848 = vunpack.c.h.b16 %v233
    %v849 = vunpack.c.l.b16 %v234
    %v850 = vunpack.c.h.b16 %v234
    %v851 = vunpack.c.l.b16 %v235
    %v852 = vunpack.c.h.b16 %v235
    %v853 = vunpack.c.l.b16 %v236
    %v854 = vunpack.c.h.b16 %v236
    %v855 = vunpack.c.l.b16 %v237
    %v856 = vunpack.c.h.b16 %v237
    %v857 = vunpack.c.l.b16 %v238
    %v858 = vunpack.c.h.b16 %v238
    %v859 = vunpack.c.l.b16 %v239
    %v860 = vunpack.c.h.b16 %v239
    %v861 = vunpack.c.l.b16 %v240
    %v862 = vunpack.c.h.b16 %v240
    %v863 = vpack.c.b16 %v475, %v471
    %v864 = vpack.c.b16 %v476, %v472
    %v865 = vpack.c.b16 %v477, %v473
    %v866 = vpack.c.b16 %v478, %v474
    %v867 = vpack.c.b16 %v483, %v479
    %v868 = vpack.c.b16 %v484, %v480
    %v869 = vpack.c.b16 %v485, %v481
    %v870 = vpack.c.b16 %v486, %v482
    %v871 = vpack.c.b16 %v491, %v487
    %v872 = vpack.c.b16 %v492, %v488
    %v873 = vpack.c.b16 %v493, %v489
    %v874 = vpack.c.b16 %v494, %v490
    %v875 = vpack.c.b16 %v499, %v495
    %v876 = vpack.c.b16 %v500, %v496
    %v877 = vpack.c.b16 %v501, %v497
    %v878 = vpack.c.b16 %v502, %v498
    %v879 = vpack.c.b16 %v507, %v503
    %v880 = vpack.c.b16 %v508, %v504
    %v881 = vpack.c.b16 %v509, %v505
    %v882 = vpack.c.b16 %v510, %v506
    %v883 = vpack.c.b16 %v515, %v511
    %v884 = vpack.c.b16 %v516, %v512
    %v885 = vpack.c.b16 %v517, %v513
    %v886 = vpack.c.b16 %v518, %v514
    %v887 = vpack.c.b16 %v523, %v519
    %v888 = vpack.c.b16 %v524, %v520
    %v889 = vpack.c.b16 %v525, %v521
    %v890 = vpack.c.b16 %v526, %v522
    %v891 = vpack.c.b16 %v531, %v527
    %v892 = vpack.c.b16 %v532, %v528
    %v893 = vpack.c.b16 %v533, %v529
    %v894 = vpack.c.b16 %v534, %v530
    %v895 = vpack.c.b16 %v539, %v535
    %v896 = vpack.c.b16 %v540, %v536
    %v897 = vpack.c.b16 %v541, %v537
    %v898 = vpack.c.b16 %v542, %v538
    %v899 = vpack.c.b16 %v547, %v543
    %v900 = vpack.c.b16 %v548, %v544
    %v901 = vpack.c.b16 %v549, %v545
    %v902 = vpack.c.b16 %v550, %v546
    %v903 = vpack.c.b16 %v555, %v551
    %v904 = vpack.c.b16 %v556, %v552
    %v905 = vpack.c.b16 %v557, %v553
    %v906 = vpack.c.b16 %v558, %v554
    %v907 = vpack.c.b16 %v563, %v559
    %v908 = vpack.c.b16 %v564, %v560
    %v909 = vpack.c.b16 %v565, %v561
    %v910 = vpack.c.b16 %v566, %v562
    %v911 = vpack.c.b16 %v571, %v567
    %v912 = vpack.c.b16 %v572, %v568
    %v913 = vpack.c.b16 %v573, %v569
    %v914 = vpack.c.b16 %v574, %v570
    %v915 = vpack.c.b16 %v579, %v575
    %v916 = vpack.c.b16 %v580, %v576
    %v917 = vpack.c.b16 %v581, %v577
    %v918 = vpack.c.b16 %v582, %v578
    %v919 = vpack.c.b16 %v587, %v583
    %v920 = vpack.c.b16 %v588, %v584
    %v921 = vpack.c.b16 %v589, %v585
    %v922 = vpack.c.b16 %v590, %v586
    %v923 = vpack.c.b16 %v595, %v591
    %v924 = vpack.c.b16 %v596, %v592
    %v925 = vpack.c.b16 %v597, %v593
    %v926 = vpack.c.b16 %v598, %v594
    %v927 = vpack.c.b16 %v603, %v599
    %v928 = vpack.c.b16 %v604, %v600
    %v929 = vpack.c.b16 %v605, %v601
    %v930 = vpack.c.b16 %v606, %v602
    %v931 = vpack.c.b16 %v611, %v607
    %v932 = vpack.c.b16 %v612, %v608
    %v933 = vpack.c.b16 %v613, %v609
    %v934 = vpack.c.b16 %v614, %v610
    %v935 = vpack.c.b16 %v619, %v615
    %v936 = vpack.c.b16 %v620, %v616
    %v937 = vpack.c.b16 %v621, %v617
    %v938 = vpack.c.b16 %v622, %v618
    %v939 = vpack.c.b16 %v627, %v623
    %v940 = vpack.c.b16 %v628, %v624
    %v941 = vpack.c.b16 %v629, %v625
    %v942 = vpack.c.b16 %v630, %v626
    %v943 = vpack.c.b16 %v635, %v631
    %v944 = vpack.c.b16 %v636, %v632
    %v945 = vpack.c.b16 %v637, %v633
    %v946 = vpack.c.b16 %v638, %v634
    %v947 = vpack.c.b16 %v643, %v639
    %v948 = vpack.c.b16 %v644, %v640
    %v949 = vpack.c.b16 %v645, %v641
    %v950 = vpack.c.b16 %v646, %v642
    %v951 = vpack.c.b16 %v651, %v647
    %v952 = vpack.c.b16 %v652, %v648
    %v953 = vpack.c.b16 %v653, %v649
    %v954 = vpack.c.b16 %v654, %v650
    %v955 = vpack.c.b16 %v659, %v655
    %v956 = vpack.c.b16 %v660, %v656
    %v957 = vpack.c.b16 %v661, %v657
    %v958 = vpack.c.b16 %v662, %v658
    %v959 = vpack.c.b16 %v667, %v663
    %v960 = vpack.c.b16 %v668, %v664
    %v961 = vpack.c.b16 %v669, %v665
    %v962 = vpack.c.b16 %v670, %v666
    %v963 = vpack.c.b16 %v675, %v671
    %v964 = vpack.c.b16 %v676, %v672
    %v965 = vpack.c.b16 %v677, %v673
    %v966 = vpack.c.b16 %v678, %v674
    %v967 = vpack.c.b16 %v683, %v679
    %v968 = vpack.c.b16 %v684, %v680
    %v969 = vpack.c.b16 %v685, %v681
    %v970 = vpack.c.b16 %v686, %v682
    %v971 = vpack.c.b16 %v691, %v687
    %v972 = vpack.c.b16 %v692, %v688
    %v973 = vpack.c.b16 %v693, %v689
    %v974 = vpack.c.b16 %v694, %v690
    %v975 = vpack.c.b16 %v699, %v695
    %v976 = vpack.c.b16 %v700, %v696
    %v977 = vpack.c.b16 %v701, %v697
    %v978 = vpack.c.b16 %v702, %v698
    %v979 = vpack.c.b16 %v707, %v703
    %v980 = vpack.c.b16 %v708, %v704
    %v981 = vpack.c.b16 %v709, %v705
    %v982 = vpack.c.b16 %v710, %v706
    %v983 = vpack.c.b16 %v715, %v711
    %v984 = vpack.c.b16 %v716, %v712
    %v985 = vpack.c.b16 %v717, %v713
    %v986 = vpack.c.b16 %v718, %v714
    %v987 = vpack.c.b16 %v723, %v719
    %v988 = vpack.c.b16 %v724, %v720
    %v989 = vpack.c.b16 %v725, %v721
    %v990 = vpack.c.b16 %v726, %v722
    %v991 = vpack.c.b16 %v731, %v727
    %v992 = vpack.c.b16 %v732, %v728
    %v993 = vpack.c.b16 %v733, %v729
    %v994 = vpack.c.b16 %v734, %v730
    %v995 = vpack.c.b16 %v739, %v735
    %v996 = vpack.c.b16 %v740, %v736
    %v997 = vpack.c.b16 %v741, %v737
    %v998 = vpack.c.b16 %v742, %v738
    %v999 = vpack.c.b16 %v747, %v743
    %v1000 = vpack.c.b16 %v748, %v744
    %v1001 = vpack.c.b16 %v749, %v745
    %v1002 = vpack.c.b16 %v750, %v746
    %v1003 = vpack.c.b16 %v755, %v751
    %v1004 = vpack.c.b16 %v756, %v752
    %v1005 = vpack.c.b16 %v757, %v753
    %v1006 = vpack.c.b16 %v758, %v754
    %v1007 = vpack.c.b16 %v763, %v759
    %v1008 = vpack.c.b16 %v764, %v760
    %v1009 = vpack.c.b16 %v765, %v761
    %v1010 = vpack.c.b16 %v766, %v762
    %v1011 = vpack.c.b16 %v771, %v767
    %v1012 = vpack.c.b16 %v772, %v768
    %v1013 = vpack.c.b16 %v773, %v769
    %v1014 = vpack.c.b16 %v774, %v770
    %v1015 = vpack.c.b16 %v779, %v775
    %v1016 = vpack.c.b16 %v780, %v776
    %v1017 = vpack.c.b16 %v781, %v777
    %v1018 = vpack.c.b16 %v782, %v778
    %v1019 = vpack.c.b16 %v787, %v783
    %v1020 = vpack.c.b16 %v788, %v784
    %v1021 = vpack.c.b16 %v789, %v785
    %v1022 = vpack.c.b16 %v790, %v786
    %v1023 = vpack.c.b16 %v795, %v791
    %v1024 = vpack.c.b16 %v796, %v792
    %v1025 = vpack.c.b16 %v797, %v793
    %v1026 = vpack.c.b16 %v798, %v794
    %v1027 = vpack.c.b16 %v803, %v799
    %v1028 = vpack.c.b16 %v804, %v800
    %v1029 = vpack.c.b16 %v805, %v801
    %v1030 = vpack.c.b16 %v806, %v802
    %v1031 = vpack.c.b16 %v811, %v807
    %v1032 = vpack.c.b16 %v812, %v808
    %v1033 = vpack.c.b16 %v813, %v809
    %v1034 = vpack.c.b16 %v814, %v810
    %v1035 = vpack.c.b16 %v819, %v815
    %v1036 = vpack.c.b16 %v820, %v816
    %v1037 = vpack.c.b16 %v821, %v817
    %v1038 = vpack.c.b16 %v822, %v818
    %v1039 = vpack.c.b16 %v827, %v823
    %v1040 = vpack.c.b16 %v828, %v824
    %v1041 = vpack.c.b16 %v829, %v825
    %v1042 = vpack.c.b16 %v830, %v826
    %v1043 = vpack.c.b16 %v835, %v831
    %v1044 = vpack.c.b16 %v836, %v832
    %v1045 = vpack.c.b16 %v837, %v833
    %v1046 = vpack.c.b16 %v838, %v834
    %v1047 = vpack.c.b16 %v843, %v839
    %v1048 = vpack.c.b16 %v844, %v840
    %v1049 = vpack.c.b16 %v845, %v841
    %v1050 = vpack.c.b16 %v846, %v842
    %v1051 = vpack.c.b16 %v851, %v847
    %v1052 = vpack.c.b16 %v852, %v848
    %v1053 = vpack.c.b16 %v853, %v849
    %v1054 = vpack.c.b16 %v854, %v850
    %v1055 = vpack.c.b16 %v859, %v855
    %v1056 = vpack.c.b16 %v860, %v856
    %v1057 = vpack.c.b16 %v861, %v857
    %v1058 = vpack.c.b16 %v862, %v858
    %vm1255 = vcmask 130048
    %v1257 = vsel %vm1255, %v268, 0
    %1259 = vmatpush.bf16.msra.mxu0 %v891
    %1260 = vmatpush.bf16.msra.mxu0 %v887
    %1261 = vmatpush.bf16.msra.mxu0 %v883
    %1262 = vmatpush.bf16.msra.mxu0 %v879
    %1263 = vmatpush.bf16.msra.mxu0 %v875
    %1264 = vmatpush.bf16.msra.mxu0 %v871
    %1265 = vmatpush.bf16.msra.mxu0 %v867
    %1266 = vmatpush.bf16.msra.mxu0 %v863
    %1267 = vmatmul.bf16.gmra.mxu0 %v262
    %v1268 = vpop.f32.mrf.mxu0
    %v1269 = vadd.f32 %v243, %v1268
    %v1270 = vpop.f32.mrf.mxu0
    %1271 = vdwg.mxu0
    %1272 = vmatpush.bf16.msra.mxu0 %v923
    %1273 = vmatpush.bf16.msra.mxu0 %v919
    %1274 = vmatpush.bf16.msra.mxu0 %v915
    %1275 = vmatpush.bf16.msra.mxu0 %v911
    %1276 = vmatpush.bf16.msra.mxu0 %v907
    %1277 = vmatpush.bf16.msra.mxu0 %v903
    %1278 = vmatpush.bf16.msra.mxu0 %v899
    %1279 = vmatpush.bf16.msra.mxu0 %v895
    %1280 = vmatmul.bf16.gmra.mxu0 %v263
    %v1281 = vpop.f32.mrf.mxu0
    %v1282 = vadd.f32 %v1269, %v1281
    %v1283 = vpop.f32.mrf.mxu0
    %1284 = vdwg.mxu0
    %1285 = vmatpush.bf16.msra.mxu0 %v955
    %1286 = vmatpush.bf16.msra.mxu0 %v951
    %1287 = vmatpush.bf16.msra.mxu0 %v947
    %1288 = vmatpush.bf16.msra.mxu0 %v943
    %1289 = vmatpush.bf16.msra.mxu0 %v939
    %1290 = vmatpush.bf16.msra.mxu0 %v935
    %1291 = vmatpush.bf16.msra.mxu0 %v931
    %1292 = vmatpush.bf16.msra.mxu0 %v927
    %1293 = vmatmul.bf16.gmra.mxu0 %v264
    %v1294 = vpop.f32.mrf.mxu0
    %v1295 = vadd.f32 %v1282, %v1294
    %v1296 = vpop.f32.mrf.mxu0
    %1297 = vdwg.mxu0
    %1298 = vmatpush.bf16.msra.mxu0 %v987
    %1299 = vmatpush.bf16.msra.mxu0 %v983
    %1300 = vmatpush.bf16.msra.mxu0 %v979
    %1301 = vmatpush.bf16.msra.mxu0 %v975
    %1302 = vmatpush.bf16.msra.mxu0 %v971
    %1303 = vmatpush.bf16.msra.mxu0 %v967
    %1304 = vmatpush.bf16.msra.mxu0 %v963
    %1305 = vmatpush.bf16.msra.mxu0 %v959
    %1306 = vmatmul.bf16.gmra.mxu0 %v265
    %v1307 = vpop.f32.mrf.mxu0
    %v1308 = vadd.f32 %v1295, %v1307
    %v1309 = vpop.f32.mrf.mxu0
    %1310 = vdwg.mxu0
    %1311 = vmatpush.bf16.msra.mxu0 %v1019
    %1312 = vmatpush.bf16.msra.mxu0 %v1015
    %1313 = vmatpush.bf16.msra.mxu0 %v1011
    %1314 = vmatpush.bf16.msra.mxu0 %v1007
    %1315 = vmatpush.bf16.msra.mxu0 %v1003
    %1316 = vmatpush.bf16.msra.mxu0 %v999
    %1317 = vmatpush.bf16.msra.mxu0 %v995
    %1318 = vmatpush.bf16.msra.mxu0 %v991
    %1319 = vmatmul.bf16.gmra.mxu0 %v266
    %v1320 = vpop.f32.mrf.mxu0
    %v1321 = vadd.f32 %v1308, %v1320
    %v1322 = vpop.f32.mrf.mxu0
    %1323 = vdwg.mxu0
    %1324 = vmatpush.bf16.msra.mxu0 %v1051
    %1325 = vmatpush.bf16.msra.mxu0 %v1047
    %1326 = vmatpush.bf16.msra.mxu0 %v1043
    %1327 = vmatpush.bf16.msra.mxu0 %v1039
    %1328 = vmatpush.bf16.msra.mxu0 %v1035
    %1329 = vmatpush.bf16.msra.mxu0 %v1031
    %1330 = vmatpush.bf16.msra.mxu0 %v1027
    %1331 = vmatpush.bf16.msra.mxu0 %v1023
    %1332 = vmatmul.bf16.gmra.mxu0 %v267
    %v1333 = vpop.f32.mrf.mxu0
    %v1334 = vadd.f32 %v1321, %v1333
    %v1335 = vpop.f32.mrf.mxu0
    %1336 = vdwg.mxu0
    %1337 = vmatpush.bf16.msra.mxu0 0
    %1338 = vmatpush.bf16.msra.mxu0 0
    %1339 = vmatpush.bf16.msra.mxu0 0
    %1340 = vmatpush.bf16.msra.mxu0 0
    %1341 = vmatpush.bf16.msra.mxu0 0
    %1342 = vmatpush.bf16.msra.mxu0 0
    %1343 = vmatpush.bf16.msra.mxu0 0
    %1344 = vmatpush.bf16.msra.mxu0 %v1055
    %1345 = vmatmul.bf16.gmra.mxu0 %v1257
    %v1346 = vpop.f32.mrf.mxu0
    %v1347 = vadd.f32 %v1334, %v1346
    %v1348 = vpop.f32.mrf.mxu0
    %1349 = vdwg.mxu0
    %1350 = vmatpush.bf16.msra.mxu0 %v892
    %1351 = vmatpush.bf16.msra.mxu0 %v888
    %1352 = vmatpush.bf16.msra.mxu0 %v884
    %1353 = vmatpush.bf16.msra.mxu0 %v880
    %1354 = vmatpush.bf16.msra.mxu0 %v876
    %1355 = vmatpush.bf16.msra.mxu0 %v872
    %1356 = vmatpush.bf16.msra.mxu0 %v868
    %1357 = vmatpush.bf16.msra.mxu0 %v864
    %1358 = vmatmul.bf16.gmra.mxu0 %v262
    %v1359 = vpop.f32.mrf.mxu0
    %v1360 = vadd.f32 %v244, %v1359
    %v1361 = vpop.f32.mrf.mxu0
    %1362 = vdwg.mxu0
    %1363 = vmatpush.bf16.msra.mxu0 %v924
    %1364 = vmatpush.bf16.msra.mxu0 %v920
    %1365 = vmatpush.bf16.msra.mxu0 %v916
    %1366 = vmatpush.bf16.msra.mxu0 %v912
    %1367 = vmatpush.bf16.msra.mxu0 %v908
    %1368 = vmatpush.bf16.msra.mxu0 %v904
    %1369 = vmatpush.bf16.msra.mxu0 %v900
    %1370 = vmatpush.bf16.msra.mxu0 %v896
    %1371 = vmatmul.bf16.gmra.mxu0 %v263
    %v1372 = vpop.f32.mrf.mxu0
    %v1373 = vadd.f32 %v1360, %v1372
    %v1374 = vpop.f32.mrf.mxu0
    %1375 = vdwg.mxu0
    %1376 = vmatpush.bf16.msra.mxu0 %v956
    %1377 = vmatpush.bf16.msra.mxu0 %v952
    %1378 = vmatpush.bf16.msra.mxu0 %v948
    %1379 = vmatpush.bf16.msra.mxu0 %v944
    %1380 = vmatpush.bf16.msra.mxu0 %v940
    %1381 = vmatpush.bf16.msra.mxu0 %v936
    %1382 = vmatpush.bf16.msra.mxu0 %v932
    %1383 = vmatpush.bf16.msra.mxu0 %v928
    %1384 = vmatmul.bf16.gmra.mxu0 %v264
    %v1385 = vpop.f32.mrf.mxu0
    %v1386 = vadd.f32 %v1373, %v1385
    %v1387 = vpop.f32.mrf.mxu0
    %1388 = vdwg.mxu0
    %1389 = vmatpush.bf16.msra.mxu0 %v988
    %1390 = vmatpush.bf16.msra.mxu0 %v984
    %1391 = vmatpush.bf16.msra.mxu0 %v980
    %1392 = vmatpush.bf16.msra.mxu0 %v976
    %1393 = vmatpush.bf16.msra.mxu0 %v972
    %1394 = vmatpush.bf16.msra.mxu0 %v968
    %1395 = vmatpush.bf16.msra.mxu0 %v964
    %1396 = vmatpush.bf16.msra.mxu0 %v960
    %1397 = vmatmul.bf16.gmra.mxu0 %v265
    %v1398 = vpop.f32.mrf.mxu0
    %v1399 = vadd.f32 %v1386, %v1398
    %v1400 = vpop.f32.mrf.mxu0
    %1401 = vdwg.mxu0
    %1402 = vmatpush.bf16.msra.mxu0 %v1020
    %1403 = vmatpush.bf16.msra.mxu0 %v1016
    %1404 = vmatpush.bf16.msra.mxu0 %v1012
    %1405 = vmatpush.bf16.msra.mxu0 %v1008
    %1406 = vmatpush.bf16.msra.mxu0 %v1004
    %1407 = vmatpush.bf16.msra.mxu0 %v1000
    %1408 = vmatpush.bf16.msra.mxu0 %v996
    %1409 = vmatpush.bf16.msra.mxu0 %v992
    %1410 = vmatmul.bf16.gmra.mxu0 %v266
    %v1411 = vpop.f32.mrf.mxu0
    %v1412 = vadd.f32 %v1399, %v1411
    %v1413 = vpop.f32.mrf.mxu0
    %1414 = vdwg.mxu0
    %1415 = vmatpush.bf16.msra.mxu0 %v1052
    %1416 = vmatpush.bf16.msra.mxu0 %v1048
    %1417 = vmatpush.bf16.msra.mxu0 %v1044
    %1418 = vmatpush.bf16.msra.mxu0 %v1040
    %1419 = vmatpush.bf16.msra.mxu0 %v1036
    %1420 = vmatpush.bf16.msra.mxu0 %v1032
    %1421 = vmatpush.bf16.msra.mxu0 %v1028
    %1422 = vmatpush.bf16.msra.mxu0 %v1024
    %1423 = vmatmul.bf16.gmra.mxu0 %v267
    %v1424 = vpop.f32.mrf.mxu0
    %v1425 = vadd.f32 %v1412, %v1424
    %v1426 = vpop.f32.mrf.mxu0
    %1427 = vdwg.mxu0
    %1428 = vmatpush.bf16.msra.mxu0 0
    %1429 = vmatpush.bf16.msra.mxu0 0
    %1430 = vmatpush.bf16.msra.mxu0 0
    %1431 = vmatpush.bf16.msra.mxu0 0
    %1432 = vmatpush.bf16.msra.mxu0 0
    %1433 = vmatpush.bf16.msra.mxu0 0
    %1434 = vmatpush.bf16.msra.mxu0 0
    %1435 = vmatpush.bf16.msra.mxu0 %v1056
    %1436 = vmatmul.bf16.gmra.mxu0 %v1257
    %v1437 = vpop.f32.mrf.mxu0
    %v1438 = vadd.f32 %v1425, %v1437
    %v1439 = vpop.f32.mrf.mxu0
    %1440 = vdwg.mxu0
    %1441 = vmatpush.bf16.msra.mxu0 %v893
    %1442 = vmatpush.bf16.msra.mxu0 %v889
    %1443 = vmatpush.bf16.msra.mxu0 %v885
    %1444 = vmatpush.bf16.msra.mxu0 %v881
    %1445 = vmatpush.bf16.msra.mxu0 %v877
    %1446 = vmatpush.bf16.msra.mxu0 %v873
    %1447 = vmatpush.bf16.msra.mxu0 %v869
    %1448 = vmatpush.bf16.msra.mxu0 %v865
    %1449 = vmatmul.bf16.gmra.mxu0 %v262
    %v1450 = vpop.f32.mrf.mxu0
    %v1451 = vadd.f32 %v245, %v1450
    %v1452 = vpop.f32.mrf.mxu0
    %1453 = vdwg.mxu0
    %1454 = vmatpush.bf16.msra.mxu0 %v925
    %1455 = vmatpush.bf16.msra.mxu0 %v921
    %1456 = vmatpush.bf16.msra.mxu0 %v917
    %1457 = vmatpush.bf16.msra.mxu0 %v913
    %1458 = vmatpush.bf16.msra.mxu0 %v909
    %1459 = vmatpush.bf16.msra.mxu0 %v905
    %1460 = vmatpush.bf16.msra.mxu0 %v901
    %1461 = vmatpush.bf16.msra.mxu0 %v897
    %1462 = vmatmul.bf16.gmra.mxu0 %v263
    %v1463 = vpop.f32.mrf.mxu0
    %v1464 = vadd.f32 %v1451, %v1463
    %v1465 = vpop.f32.mrf.mxu0
    %1466 = vdwg.mxu0
    %1467 = vmatpush.bf16.msra.mxu0 %v957
    %1468 = vmatpush.bf16.msra.mxu0 %v953
    %1469 = vmatpush.bf16.msra.mxu0 %v949
    %1470 = vmatpush.bf16.msra.mxu0 %v945
    %1471 = vmatpush.bf16.msra.mxu0 %v941
    %1472 = vmatpush.bf16.msra.mxu0 %v937
    %1473 = vmatpush.bf16.msra.mxu0 %v933
    %1474 = vmatpush.bf16.msra.mxu0 %v929
    %1475 = vmatmul.bf16.gmra.mxu0 %v264
    %v1476 = vpop.f32.mrf.mxu0
    %v1477 = vadd.f32 %v1464, %v1476
    %v1478 = vpop.f32.mrf.mxu0
    %1479 = vdwg.mxu0
    %1480 = vmatpush.bf16.msra.mxu0 %v989
    %1481 = vmatpush.bf16.msra.mxu0 %v985
    %1482 = vmatpush.bf16.msra.mxu0 %v981
    %1483 = vmatpush.bf16.msra.mxu0 %v977
    %1484 = vmatpush.bf16.msra.mxu0 %v973
    %1485 = vmatpush.bf16.msra.mxu0 %v969
    %1486 = vmatpush.bf16.msra.mxu0 %v965
    %1487 = vmatpush.bf16.msra.mxu0 %v961
    %1488 = vmatmul.bf16.gmra.mxu0 %v265
    %v1489 = vpop.f32.mrf.mxu0
    %v1490 = vadd.f32 %v1477, %v1489
    %v1491 = vpop.f32.mrf.mxu0
    %1492 = vdwg.mxu0
    %1493 = vmatpush.bf16.msra.mxu0 %v1021
    %1494 = vmatpush.bf16.msra.mxu0 %v1017
    %1495 = vmatpush.bf16.msra.mxu0 %v1013
    %1496 = vmatpush.bf16.msra.mxu0 %v1009
    %1497 = vmatpush.bf16.msra.mxu0 %v1005
    %1498 = vmatpush.bf16.msra.mxu0 %v1001
    %1499 = vmatpush.bf16.msra.mxu0 %v997
    %1500 = vmatpush.bf16.msra.mxu0 %v993
    %1501 = vmatmul.bf16.gmra.mxu0 %v266
    %v1502 = vpop.f32.mrf.mxu0
    %v1503 = vadd.f32 %v1490, %v1502
    %v1504 = vpop.f32.mrf.mxu0
    %1505 = vdwg.mxu0
    %1506 = vmatpush.bf16.msra.mxu0 %v1053
    %1507 = vmatpush.bf16.msra.mxu0 %v1049
    %1508 = vmatpush.bf16.msra.mxu0 %v1045
    %1509 = vmatpush.bf16.msra.mxu0 %v1041
    %1510 = vmatpush.bf16.msra.mxu0 %v1037
    %1511 = vmatpush.bf16.msra.mxu0 %v1033
    %1512 = vmatpush.bf16.msra.mxu0 %v1029
    %1513 = vmatpush.bf16.msra.mxu0 %v1025
    %1514 = vmatmul.bf16.gmra.mxu0 %v267
    %v1515 = vpop.f32.mrf.mxu0
    %v1516 = vadd.f32 %v1503, %v1515
    %v1517 = vpop.f32.mrf.mxu0
    %1518 = vdwg.mxu0
    %1519 = vmatpush.bf16.msra.mxu0 0
    %1520 = vmatpush.bf16.msra.mxu0 0
    %1521 = vmatpush.bf16.msra.mxu0 0
    %1522 = vmatpush.bf16.msra.mxu0 0
    %1523 = vmatpush.bf16.msra.mxu0 0
    %1524 = vmatpush.bf16.msra.mxu0 0
    %1525 = vmatpush.bf16.msra.mxu0 0
    %1526 = vmatpush.bf16.msra.mxu0 %v1057
    %1527 = vmatmul.bf16.gmra.mxu0 %v1257
    %v1528 = vpop.f32.mrf.mxu0
    %v1529 = vadd.f32 %v1516, %v1528
    %v1530 = vpop.f32.mrf.mxu0
    %1531 = vdwg.mxu0
    %1532 = vmatpush.bf16.msra.mxu0 %v894
    %1533 = vmatpush.bf16.msra.mxu0 %v890
    %1534 = vmatpush.bf16.msra.mxu0 %v886
    %1535 = vmatpush.bf16.msra.mxu0 %v882
    %1536 = vmatpush.bf16.msra.mxu0 %v878
    %1537 = vmatpush.bf16.msra.mxu0 %v874
    %1538 = vmatpush.bf16.msra.mxu0 %v870
    %1539 = vmatpush.bf16.msra.mxu0 %v866
    %1540 = vmatmul.bf16.gmra.mxu0 %v262
    %v1541 = vpop.f32.mrf.mxu0
    %v1542 = vadd.f32 %v246, %v1541
    %v1543 = vpop.f32.mrf.mxu0
    %1544 = vdwg.mxu0
    %1545 = vmatpush.bf16.msra.mxu0 %v926
    %1546 = vmatpush.bf16.msra.mxu0 %v922
    %1547 = vmatpush.bf16.msra.mxu0 %v918
    %1548 = vmatpush.bf16.msra.mxu0 %v914
    %1549 = vmatpush.bf16.msra.mxu0 %v910
    %1550 = vmatpush.bf16.msra.mxu0 %v906
    %1551 = vmatpush.bf16.msra.mxu0 %v902
    %1552 = vmatpush.bf16.msra.mxu0 %v898
    %1553 = vmatmul.bf16.gmra.mxu0 %v263
    %v1554 = vpop.f32.mrf.mxu0
    %v1555 = vadd.f32 %v1542, %v1554
    %v1556 = vpop.f32.mrf.mxu0
    %1557 = vdwg.mxu0
    %1558 = vmatpush.bf16.msra.mxu0 %v958
    %1559 = vmatpush.bf16.msra.mxu0 %v954
    %1560 = vmatpush.bf16.msra.mxu0 %v950
    %1561 = vmatpush.bf16.msra.mxu0 %v946
    %1562 = vmatpush.bf16.msra.mxu0 %v942
    %1563 = vmatpush.bf16.msra.mxu0 %v938
    %1564 = vmatpush.bf16.msra.mxu0 %v934
    %1565 = vmatpush.bf16.msra.mxu0 %v930
    %1566 = vmatmul.bf16.gmra.mxu0 %v264
    %v1567 = vpop.f32.mrf.mxu0
    %v1568 = vadd.f32 %v1555, %v1567
    %v1569 = vpop.f32.mrf.mxu0
    %1570 = vdwg.mxu0
    %1571 = vmatpush.bf16.msra.mxu0 %v990
    %1572 = vmatpush.bf16.msra.mxu0 %v986
    %1573 = vmatpush.bf16.msra.mxu0 %v982
    %1574 = vmatpush.bf16.msra.mxu0 %v978
    %1575 = vmatpush.bf16.msra.mxu0 %v974
    %1576 = vmatpush.bf16.msra.mxu0 %v970
    %1577 = vmatpush.bf16.msra.mxu0 %v966
    %1578 = vmatpush.bf16.msra.mxu0 %v962
    %1579 = vmatmul.bf16.gmra.mxu0 %v265
    %v1580 = vpop.f32.mrf.mxu0
    %v1581 = vadd.f32 %v1568, %v1580
    %v1582 = vpop.f32.mrf.mxu0
    %1583 = vdwg.mxu0
    %1584 = vmatpush.bf16.msra.mxu0 %v1022
    %1585 = vmatpush.bf16.msra.mxu0 %v1018
    %1586 = vmatpush.bf16.msra.mxu0 %v1014
    %1587 = vmatpush.bf16.msra.mxu0 %v1010
    %1588 = vmatpush.bf16.msra.mxu0 %v1006
    %1589 = vmatpush.bf16.msra.mxu0 %v1002
    %1590 = vmatpush.bf16.msra.mxu0 %v998
    %1591 = vmatpush.bf16.msra.mxu0 %v994
    %1592 = vmatmul.bf16.gmra.mxu0 %v266
    %v1593 = vpop.f32.mrf.mxu0
    %v1594 = vadd.f32 %v1581, %v1593
    %v1595 = vpop.f32.mrf.mxu0
    %1596 = vdwg.mxu0
    %1597 = vmatpush.bf16.msra.mxu0 %v1054
    %1598 = vmatpush.bf16.msra.mxu0 %v1050
    %1599 = vmatpush.bf16.msra.mxu0 %v1046
    %1600 = vmatpush.bf16.msra.mxu0 %v1042
    %1601 = vmatpush.bf16.msra.mxu0 %v1038
    %1602 = vmatpush.bf16.msra.mxu0 %v1034
    %1603 = vmatpush.bf16.msra.mxu0 %v1030
    %1604 = vmatpush.bf16.msra.mxu0 %v1026
    %1605 = vmatmul.bf16.gmra.mxu0 %v267
    %v1606 = vpop.f32.mrf.mxu0
    %v1607 = vadd.f32 %v1594, %v1606
    %v1608 = vpop.f32.mrf.mxu0
    %1609 = vdwg.mxu0
    %1610 = vmatpush.bf16.msra.mxu0 0
    %1611 = vmatpush.bf16.msra.mxu0 0
    %1612 = vmatpush.bf16.msra.mxu0 0
    %1613 = vmatpush.bf16.msra.mxu0 0
    %1614 = vmatpush.bf16.msra.mxu0 0
    %1615 = vmatpush.bf16.msra.mxu0 0
    %1616 = vmatpush.bf16.msra.mxu0 0
    %1617 = vmatpush.bf16.msra.mxu0 %v1058
    %1618 = vmatmul.bf16.gmra.mxu0 %v1257
    %v1619 = vpop.f32.mrf.mxu0
    %v1620 = vadd.f32 %v1607, %v1619
    %v1621 = vpop.f32.mrf.mxu0
    %1622 = vdwg.mxu0
    %v1623 = vmax.f32 %v1347, 0.0
    %v1624 = vmax.f32 %v1438, 0.0
    %v1625 = vmax.f32 %v1529, 0.0
    %v1626 = vmax.f32 %v1620, 0.0
    %v1627 = vpack.c.bf16 %v1623, %v1623
    %v1628 = vpack.c.bf16 %v1624, %v1624
    %v1629 = vpack.c.bf16 %v1625, %v1625
    %v1630 = vpack.c.bf16 %v1626, %v1626
    %v1631 = vld [vmem:[%s3] sm:$0xf]
    %v1632 = vld [vmem:[%s3 + $0x4] sm:$0xf]
    %v1633 = vld [vmem:[%s3 + $0x8] sm:$0xf]
    %v1634 = vld [vmem:[%s3 + $0xc] sm:$0xf]
    %v1635 = vld [vmem:[%s3 + $0x10] sm:$0xf]
    %v1636 = vld [vmem:[%s3 + $0x14] sm:$0xf]
    %v1637 = vld [vmem:[%s3 + $0x18] sm:$0xf]
    %v1638 = vld [vmem:[%s3 + $0x1c] sm:$0xf]
    %v1639 = vld [vmem:[%s3 + $0x20] sm:$0xf]
    %v1640 = vld [vmem:[%s3 + $0x24] sm:$0xf]
    %v1641 = vld [vmem:[%s3 + $0x28] sm:$0xf]
    %v1642 = vld [vmem:[%s3 + $0x2c] sm:$0xf]
    %v1643 = vld [vmem:[%s3 + $0x30] sm:$0xf]
    %v1644 = vld [vmem:[%s3 + $0x34] sm:$0xf]
    %v1645 = vld [vmem:[%s3 + $0x38] sm:$0xf]
    %v1646 = vld [vmem:[%s3 + $0x3c] sm:$0xf]
    %v1647 = vld [vmem:[%s3 + $0x40] sm:$0xf]
    %v1648 = vld [vmem:[%s3 + $0x44] sm:$0xf]
    %v1649 = vld [vmem:[%s3 + $0x48] sm:$0xf]
    %v1650 = vld [vmem:[%s3 + $0x4c] sm:$0xf]
    %v1651 = vld [vmem:[%s3 + $0x50] sm:$0xf]
    %v1652 = vld [vmem:[%s3 + $0x54] sm:$0xf]
    %v1653 = vld [vmem:[%s3 + $0x58] sm:$0xf]
    %v1654 = vld [vmem:[%s3 + $0x5c] sm:$0xf]
    %v1655 = vld [vmem:[%s3 + $0x60] sm:$0xf]
    %v1656 = vld [vmem:[%s3 + $0x64] sm:$0xf]
    %v1657 = vld [vmem:[%s3 + $0x68] sm:$0xf]
    %v1658 = vld [vmem:[%s3 + $0x6c] sm:$0xf]
    %v1659 = vld [vmem:[%s3 + $0x70] sm:$0xf]
    %v1660 = vld [vmem:[%s3 + $0x74] sm:$0xf]
    %v1661 = vld [vmem:[%s3 + $0x78] sm:$0xf]
    %v1662 = vld [vmem:[%s3 + $0x7c] sm:$0xf]
    %v1663 = vld [vmem:[%s3 + $0x80] sm:$0xf]
    %v1664 = vld [vmem:[%s3 + $0x84] sm:$0xf]
    %v1665 = vld [vmem:[%s3 + $0x88] sm:$0xf]
    %v1666 = vld [vmem:[%s3 + $0x8c] sm:$0xf]
    %v1667 = vld [vmem:[%s3 + $0x90] sm:$0xf]
    %v1668 = vld [vmem:[%s3 + $0x94] sm:$0xf]
    %v1669 = vld [vmem:[%s3 + $0x98] sm:$0xf]
    %v1670 = vld [vmem:[%s3 + $0x9c] sm:$0xf]
    %v1671 = vld [vmem:[%s3 + $0xa0] sm:$0xf]
    %v1672 = vld [vmem:[%s3 + $0xa4] sm:$0xf]
    %v1673 = vld [vmem:[%s3 + $0xa8] sm:$0xf]
    %v1674 = vld [vmem:[%s3 + $0xac] sm:$0xf]
    %v1675 = vld [vmem:[%s3 + $0xb0] sm:$0xf]
    %v1676 = vld [vmem:[%s3 + $0xb4] sm:$0xf]
    %v1677 = vld [vmem:[%s3 + $0xb8] sm:$0xf]
    %v1678 = vld [vmem:[%s3 + $0xbc] sm:$0xf]
    %v1679 = vld [vmem:[%s3 + $0xc0] sm:$0xf]
    %v1680 = vld [vmem:[%s3 + $0xc4] sm:$0xf]
    %v1681 = vld [vmem:[%s4] sm:$0x1]
    %v1683 = vperm.slane %v1681, 0
    %v1735 = vunpack.c.l.b16 %v1631
    %v1736 = vunpack.c.l.b16 %v1632
    %v1737 = vunpack.c.l.b16 %v1633
    %v1738 = vunpack.c.l.b16 %v1634
    %v1739 = vunpack.c.l.b16 %v1635
    %v1740 = vunpack.c.l.b16 %v1636
    %v1741 = vunpack.c.l.b16 %v1637
    %v1742 = vunpack.c.l.b16 %v1638
    %v1743 = vunpack.c.l.b16 %v1639
    %v1744 = vunpack.c.l.b16 %v1640
    %v1745 = vunpack.c.l.b16 %v1641
    %v1746 = vunpack.c.l.b16 %v1642
    %v1747 = vunpack.c.l.b16 %v1643
    %v1748 = vunpack.c.l.b16 %v1644
    %v1749 = vunpack.c.l.b16 %v1645
    %v1750 = vunpack.c.l.b16 %v1646
    %v1751 = vunpack.c.l.b16 %v1647
    %v1752 = vunpack.c.l.b16 %v1648
    %v1753 = vunpack.c.l.b16 %v1649
    %v1754 = vunpack.c.l.b16 %v1650
    %v1755 = vunpack.c.l.b16 %v1651
    %v1756 = vunpack.c.l.b16 %v1652
    %v1757 = vunpack.c.l.b16 %v1653
    %v1758 = vunpack.c.l.b16 %v1654
    %v1759 = vunpack.c.l.b16 %v1655
    %v1760 = vunpack.c.l.b16 %v1656
    %v1761 = vunpack.c.l.b16 %v1657
    %v1762 = vunpack.c.l.b16 %v1658
    %v1763 = vunpack.c.l.b16 %v1659
    %v1764 = vunpack.c.l.b16 %v1660
    %v1765 = vunpack.c.l.b16 %v1661
    %v1766 = vunpack.c.l.b16 %v1662
    %v1767 = vunpack.c.l.b16 %v1663
    %v1768 = vunpack.c.l.b16 %v1664
    %v1769 = vunpack.c.l.b16 %v1665
    %v1770 = vunpack.c.l.b16 %v1666
    %v1771 = vunpack.c.l.b16 %v1667
    %v1772 = vunpack.c.l.b16 %v1668
    %v1773 = vunpack.c.l.b16 %v1669
    %v1774 = vunpack.c.l.b16 %v1670
    %v1775 = vunpack.c.l.b16 %v1671
    %v1776 = vunpack.c.l.b16 %v1672
    %v1777 = vunpack.c.l.b16 %v1673
    %v1778 = vunpack.c.l.b16 %v1674
    %v1779 = vunpack.c.l.b16 %v1675
    %v1780 = vunpack.c.l.b16 %v1676
    %v1781 = vunpack.c.l.b16 %v1677
    %v1782 = vunpack.c.l.b16 %v1678
    %v1783 = vunpack.c.l.b16 %v1679
    %v1784 = vunpack.c.l.b16 %v1680
    %v1785 = vpack.c.b16 %v1736, %v1735
    %v1786 = vpack.c.b16 %v1738, %v1737
    %v1787 = vpack.c.b16 %v1740, %v1739
    %v1788 = vpack.c.b16 %v1742, %v1741
    %v1789 = vpack.c.b16 %v1744, %v1743
    %v1790 = vpack.c.b16 %v1746, %v1745
    %v1791 = vpack.c.b16 %v1748, %v1747
    %v1792 = vpack.c.b16 %v1750, %v1749
    %v1793 = vpack.c.b16 %v1752, %v1751
    %v1794 = vpack.c.b16 %v1754, %v1753
    %v1795 = vpack.c.b16 %v1756, %v1755
    %v1796 = vpack.c.b16 %v1758, %v1757
    %v1797 = vpack.c.b16 %v1760, %v1759
    %v1798 = vpack.c.b16 %v1762, %v1761
    %v1799 = vpack.c.b16 %v1764, %v1763
    %v1800 = vpack.c.b16 %v1766, %v1765
    %v1801 = vpack.c.b16 %v1768, %v1767
    %v1802 = vpack.c.b16 %v1770, %v1769
    %v1803 = vpack.c.b16 %v1772, %v1771
    %v1804 = vpack.c.b16 %v1774, %v1773
    %v1805 = vpack.c.b16 %v1776, %v1775
    %v1806 = vpack.c.b16 %v1778, %v1777
    %v1807 = vpack.c.b16 %v1780, %v1779
    %v1808 = vpack.c.b16 %v1782, %v1781
    %v1809 = vpack.c.b16 %v1784, %v1783
    %v1836 = vsel %vm1255, %v1630, 0
    %1838 = vmatpush.bf16.msra.mxu0 %v1792
    %1839 = vmatpush.bf16.msra.mxu0 %v1791
    %1840 = vmatpush.bf16.msra.mxu0 %v1790
    %1841 = vmatpush.bf16.msra.mxu0 %v1789
    %1842 = vmatpush.bf16.msra.mxu0 %v1788
    %1843 = vmatpush.bf16.msra.mxu0 %v1787
    %1844 = vmatpush.bf16.msra.mxu0 %v1786
    %1845 = vmatpush.bf16.msra.mxu0 %v1785
    %1846 = vmatmul.bf16.gmra.mxu0 %v1627
    %v1847 = vpop.f32.mrf.mxu0
    %v1848 = vadd.f32 %v1683, %v1847
    %v1849 = vpop.f32.mrf.mxu0
    %1850 = vdwg.mxu0
    %1851 = vmatpush.bf16.msra.mxu0 %v1800
    %1852 = vmatpush.bf16.msra.mxu0 %v1799
    %1853 = vmatpush.bf16.msra.mxu0 %v1798
    %1854 = vmatpush.bf16.msra.mxu0 %v1797
    %1855 = vmatpush.bf16.msra.mxu0 %v1796
    %1856 = vmatpush.bf16.msra.mxu0 %v1795
    %1857 = vmatpush.bf16.msra.mxu0 %v1794
    %1858 = vmatpush.bf16.msra.mxu0 %v1793
    %1859 = vmatmul.bf16.gmra.mxu0 %v1628
    %v1860 = vpop.f32.mrf.mxu0
    %v1861 = vadd.f32 %v1848, %v1860
    %v1862 = vpop.f32.mrf.mxu0
    %1863 = vdwg.mxu0
    %1864 = vmatpush.bf16.msra.mxu0 %v1808
    %1865 = vmatpush.bf16.msra.mxu0 %v1807
    %1866 = vmatpush.bf16.msra.mxu0 %v1806
    %1867 = vmatpush.bf16.msra.mxu0 %v1805
    %1868 = vmatpush.bf16.msra.mxu0 %v1804
    %1869 = vmatpush.bf16.msra.mxu0 %v1803
    %1870 = vmatpush.bf16.msra.mxu0 %v1802
    %1871 = vmatpush.bf16.msra.mxu0 %v1801
    %1872 = vmatmul.bf16.gmra.mxu0 %v1629
    %v1873 = vpop.f32.mrf.mxu0
    %v1874 = vadd.f32 %v1861, %v1873
    %v1875 = vpop.f32.mrf.mxu0
    %1876 = vdwg.mxu0
    %1877 = vmatpush.bf16.msra.mxu0 0
    %1878 = vmatpush.bf16.msra.mxu0 0
    %1879 = vmatpush.bf16.msra.mxu0 0
    %1880 = vmatpush.bf16.msra.mxu0 0
    %1881 = vmatpush.bf16.msra.mxu0 0
    %1882 = vmatpush.bf16.msra.mxu0 0
    %1883 = vmatpush.bf16.msra.mxu0 0
    %1884 = vmatpush.bf16.msra.mxu0 %v1809
    %1885 = vmatmul.bf16.gmra.mxu0 %v1836
    %v1886 = vpop.f32.mrf.mxu0
    %v1887 = vadd.f32 %v1874, %v1886
    %v1888 = vpop.f32.mrf.mxu0
    %1889 = vdwg.mxu0
    %v1890 = vmul.f32 %v1887, 0.5
    %v1891 = vmul.f32 %v1890, 1.442695
    %v1892 = vpow.pop %v1891
    %v1893 = vld [vmem:[%s5] sm:$0xff]
    %1895 = vrot.lane.b32.xlu0 %v1892, 108
    %v1896 = vpop.permute.xlu0 %1895
    %v1898 = vmul.f32 %v1893, %v1896
    %v1899 = vadd.f32 %v1887, %v1898
    %v1900 = vpack.c.bf16 %v1899, %v1899
    %v1901 = vld [vmem:[%s6] sm:$0xff]
    %v1902 = vld [vmem:[%s6 + $0x8] sm:$0xff]
    %v1903 = vld [vmem:[%s6 + $0x10] sm:$0xff]
    %v1904 = vld [vmem:[%s6 + $0x18] sm:$0xff]
    %v1905 = vld [vmem:[%s6 + $0x20] sm:$0x33]
    %v1906 = vld [vmem:[%s6 + $0x28] sm:$0x33]
    %v1907 = vld [vmem:[%s7] sm:$0xf]
    %v1909 = vperm.slane %v1907, 0
    %v1910 = vperm.slane %v1907, 1
    %v1911 = vperm.slane %v1907, 2
    %v1912 = vperm.slane %v1907, 3
    %v1923 = vunpack.c.l.b16 %v1901
    %v1924 = vunpack.c.h.b16 %v1901
    %v1925 = vunpack.c.l.b16 %v1902
    %v1926 = vunpack.c.h.b16 %v1902
    %v1927 = vunpack.c.l.b16 %v1903
    %v1928 = vunpack.c.h.b16 %v1903
    %v1929 = vunpack.c.l.b16 %v1904
    %v1930 = vunpack.c.h.b16 %v1904
    %v1931 = vunpack.c.l.b16 %v1905
    %v1932 = vunpack.c.h.b16 %v1905
    %v1933 = vunpack.c.l.b16 %v1906
    %v1934 = vunpack.c.h.b16 %v1906
    %v1935 = vpack.c.b16 %v1927, %v1923
    %v1936 = vpack.c.b16 %v1928, %v1924
    %v1937 = vpack.c.b16 %v1929, %v1925
    %v1938 = vpack.c.b16 %v1930, %v1926
    %v1939 = vpack.c.b16 %v1931, %v1931
    %v1940 = vpack.c.b16 %v1932, %v1932
    %v1941 = vpack.c.b16 %v1933, %v1933
    %v1942 = vpack.c.b16 %v1934, %v1934
    %vm1947 = vcmask 162816
    %v1949 = vsel %vm1947, %v1900, 0
    %vm1951 = vcmask 1041408
    %v1953 = vsel %vm1951, %v1939, 0
    %v1956 = vsel %vm1951, %v1940, 0
    %v1959 = vsel %vm1951, %v1941, 0
    %v1962 = vsel %vm1951, %v1942, 0
    %1964 = vmatpush.bf16.msra.mxu0 0
    %1965 = vmatpush.bf16.msra.mxu0 0
    %1966 = vmatpush.bf16.msra.mxu0 0
    %1967 = vmatpush.bf16.msra.mxu0 0
    %1968 = vmatpush.bf16.msra.mxu0 0
    %1969 = vmatpush.bf16.msra.mxu0 0
    %1970 = vmatpush.bf16.msra.mxu0 %v1953
    %1971 = vmatpush.bf16.msra.mxu0 %v1935
    %1972 = vmatmul.bf16.gmra.mxu0 %v1949
    %v1973 = vpop.f32.mrf.mxu0
    %v1974 = vadd.f32 %v1909, %v1973
    %v1975 = vpop.f32.mrf.mxu0
    %1976 = vdwg.mxu0
    %1977 = vmatpush.bf16.msra.mxu0 0
    %1978 = vmatpush.bf16.msra.mxu0 0
    %1979 = vmatpush.bf16.msra.mxu0 0
    %1980 = vmatpush.bf16.msra.mxu0 0
    %1981 = vmatpush.bf16.msra.mxu0 0
    %1982 = vmatpush.bf16.msra.mxu0 0
    %1983 = vmatpush.bf16.msra.mxu0 %v1956
    %1984 = vmatpush.bf16.msra.mxu0 %v1936
    %1985 = vmatmul.bf16.gmra.mxu0 %v1949
    %v1986 = vpop.f32.mrf.mxu0
    %v1987 = vadd.f32 %v1910, %v1986
    %v1988 = vpop.f32.mrf.mxu0
    %1989 = vdwg.mxu0
    %1990 = vmatpush.bf16.msra.mxu0 0
    %1991 = vmatpush.bf16.msra.mxu0 0
    %1992 = vmatpush.bf16.msra.mxu0 0
    %1993 = vmatpush.bf16.msra.mxu0 0
    %1994 = vmatpush.bf16.msra.mxu0 0
    %1995 = vmatpush.bf16.msra.mxu0 0
    %1996 = vmatpush.bf16.msra.mxu0 %v1959
    %1997 = vmatpush.bf16.msra.mxu0 %v1937
    %1998 = vmatmul.bf16.gmra.mxu0 %v1949
    %v1999 = vpop.f32.mrf.mxu0
    %v2000 = vadd.f32 %v1911, %v1999
    %v2001 = vpop.f32.mrf.mxu0
    %2002 = vdwg.mxu0
    %2003 = vmatpush.bf16.msra.mxu0 0
    %2004 = vmatpush.bf16.msra.mxu0 0
    %2005 = vmatpush.bf16.msra.mxu0 0
    %2006 = vmatpush.bf16.msra.mxu0 0
    %2007 = vmatpush.bf16.msra.mxu0 0
    %2008 = vmatpush.bf16.msra.mxu0 0
    %2009 = vmatpush.bf16.msra.mxu0 %v1962
    %2010 = vmatpush.bf16.msra.mxu0 %v1938
    %2011 = vmatmul.bf16.gmra.mxu0 %v1949
    %v2012 = vpop.f32.mrf.mxu0
    %v2013 = vadd.f32 %v1912, %v2012
    %v2014 = vpop.f32.mrf.mxu0
    %2015 = vdwg.mxu0
    %v2016 = vmax.f32 %v1974, 0.0
    %v2017 = vmax.f32 %v1987, 0.0
    %v2018 = vmax.f32 %v2000, 0.0
    %v2019 = vmax.f32 %v2013, 0.0
    %v2020 = vpack.c.bf16 %v2016, %v2016
    %v2021 = vpack.c.bf16 %v2017, %v2017
    %v2022 = vpack.c.bf16 %v2018, %v2018
    %v2023 = vpack.c.bf16 %v2019, %v2019
    %v2024 = vld [vmem:[%s8] sm:$0xff]
    %v2025 = vld [vmem:[%s8 + $0x8] sm:$0xff]
    %v2026 = vld [vmem:[%s8 + $0x10] sm:$0xff]
    %v2027 = vld [vmem:[%s8 + $0x18] sm:$0xf]
    %v2028 = vld [vmem:[%s8 + $0x1c] sm:$0xff]
    %v2029 = vld [vmem:[%s8 + $0x24] sm:$0xff]
    %v2030 = vld [vmem:[%s8 + $0x2c] sm:$0xff]
    %v2031 = vld [vmem:[%s8 + $0x34] sm:$0xf]
    %v2032 = vld [vmem:[%s8 + $0x38] sm:$0xff]
    %v2033 = vld [vmem:[%s8 + $0x40] sm:$0xff]
    %v2034 = vld [vmem:[%s8 + $0x48] sm:$0xff]
    %v2035 = vld [vmem:[%s8 + $0x50] sm:$0xf]
    %v2036 = vld [vmem:[%s8 + $0x54] sm:$0xff]
    %v2037 = vld [vmem:[%s8 + $0x5c] sm:$0xff]
    %v2038 = vld [vmem:[%s8 + $0x64] sm:$0xff]
    %v2039 = vld [vmem:[%s8 + $0x6c] sm:$0xf]
    %v2040 = vld [vmem:[%s8 + $0x70] sm:$0xff]
    %v2041 = vld [vmem:[%s8 + $0x78] sm:$0xff]
    %v2042 = vld [vmem:[%s8 + $0x80] sm:$0xff]
    %v2043 = vld [vmem:[%s8 + $0x88] sm:$0xf]
    %v2044 = vld [vmem:[%s8 + $0x8c] sm:$0xff]
    %v2045 = vld [vmem:[%s8 + $0x94] sm:$0xff]
    %v2046 = vld [vmem:[%s8 + $0x9c] sm:$0xff]
    %v2047 = vld [vmem:[%s8 + $0xa4] sm:$0xf]
    %v2048 = vld [vmem:[%s8 + $0xa8] sm:$0xff]
    %v2049 = vld [vmem:[%s8 + $0xb0] sm:$0xff]
    %v2050 = vld [vmem:[%s8 + $0xb8] sm:$0xff]
    %v2051 = vld [vmem:[%s8 + $0xc0] sm:$0xf]
    %v2052 = vld [vmem:[%s8 + $0xc4] sm:$0xff]
    %v2053 = vld [vmem:[%s8 + $0xcc] sm:$0xff]
    %v2054 = vld [vmem:[%s8 + $0xd4] sm:$0xff]
    %v2055 = vld [vmem:[%s8 + $0xdc] sm:$0xf]
    %v2056 = vld [vmem:[%s8 + $0xe0] sm:$0xff]
    %v2057 = vld [vmem:[%s8 + $0xe8] sm:$0xff]
    %v2058 = vld [vmem:[%s8 + $0xf0] sm:$0xff]
    %v2059 = vld [vmem:[%s8 + $0xf8] sm:$0xf]
    %v2060 = vld [vmem:[%s8 + $0xfc] sm:$0xff]
    %v2061 = vld [vmem:[%s8 + $0x104] sm:$0xff]
    %v2062 = vld [vmem:[%s8 + $0x10c] sm:$0xff]
    %v2063 = vld [vmem:[%s8 + $0x114] sm:$0xf]
    %v2064 = vld [vmem:[%s8 + $0x118] sm:$0xff]
    %v2065 = vld [vmem:[%s8 + $0x120] sm:$0xff]
    %v2066 = vld [vmem:[%s8 + $0x128] sm:$0xff]
    %v2067 = vld [vmem:[%s8 + $0x130] sm:$0xf]
    %v2068 = vld [vmem:[%s8 + $0x134] sm:$0xff]
    %v2069 = vld [vmem:[%s8 + $0x13c] sm:$0xff]
    %v2070 = vld [vmem:[%s8 + $0x144] sm:$0xff]
    %v2071 = vld [vmem:[%s8 + $0x14c] sm:$0xf]
    %v2072 = vld [vmem:[%s8 + $0x150] sm:$0xff]
    %v2073 = vld [vmem:[%s8 + $0x158] sm:$0xff]
    %v2074 = vld [vmem:[%s8 + $0x160] sm:$0xff]
    %v2075 = vld [vmem:[%s8 + $0x168] sm:$0xf]
    %v2076 = vld [vmem:[%s8 + $0x16c] sm:$0xff]
    %v2077 = vld [vmem:[%s8 + $0x174] sm:$0xff]
    %v2078 = vld [vmem:[%s8 + $0x17c] sm:$0xff]
    %v2079 = vld [vmem:[%s8 + $0x184] sm:$0xf]
    %v2080 = vld [vmem:[%s8 + $0x188] sm:$0xff]
    %v2081 = vld [vmem:[%s8 + $0x190] sm:$0xff]
    %v2082 = vld [vmem:[%s8 + $0x198] sm:$0xff]
    %v2083 = vld [vmem:[%s8 + $0x1a0] sm:$0xf]
    %v2084 = vld [vmem:[%s8 + $0x1a4] sm:$0xff]
    %v2085 = vld [vmem:[%s8 + $0x1ac] sm:$0xff]
    %v2086 = vld [vmem:[%s8 + $0x1b4] sm:$0xff]
    %v2087 = vld [vmem:[%s8 + $0x1bc] sm:$0xf]
    %v2088 = vld [vmem:[%s8 + $0x1c0] sm:$0xff]
    %v2089 = vld [vmem:[%s8 + $0x1c8] sm:$0xff]
    %v2090 = vld [vmem:[%s8 + $0x1d0] sm:$0xff]
    %v2091 = vld [vmem:[%s8 + $0x1d8] sm:$0xf]
    %v2092 = vld [vmem:[%s8 + $0x1dc] sm:$0xff]
    %v2093 = vld [vmem:[%s8 + $0x1e4] sm:$0xff]
    %v2094 = vld [vmem:[%s8 + $0x1ec] sm:$0xff]
    %v2095 = vld [vmem:[%s8 + $0x1f4] sm:$0xf]
    %v2096 = vld [vmem:[%s8 + $0x1f8] sm:$0xff]
    %v2097 = vld [vmem:[%s8 + $0x200] sm:$0xff]
    %v2098 = vld [vmem:[%s8 + $0x208] sm:$0xff]
    %v2099 = vld [vmem:[%s8 + $0x210] sm:$0xf]
    %v2100 = vld [vmem:[%s8 + $0x214] sm:$0xff]
    %v2101 = vld [vmem:[%s8 + $0x21c] sm:$0xff]
    %v2102 = vld [vmem:[%s8 + $0x224] sm:$0xff]
    %v2103 = vld [vmem:[%s8 + $0x22c] sm:$0xf]
    %v2104 = vld [vmem:[%s8 + $0x230] sm:$0xff]
    %v2105 = vld [vmem:[%s8 + $0x238] sm:$0xff]
    %v2106 = vld [vmem:[%s8 + $0x240] sm:$0xff]
    %v2107 = vld [vmem:[%s8 + $0x248] sm:$0xf]
    %v2108 = vld [vmem:[%s8 + $0x24c] sm:$0xff]
    %v2109 = vld [vmem:[%s8 + $0x254] sm:$0xff]
    %v2110 = vld [vmem:[%s8 + $0x25c] sm:$0xff]
    %v2111 = vld [vmem:[%s8 + $0x264] sm:$0xf]
    %v2112 = vld [vmem:[%s8 + $0x268] sm:$0xff]
    %v2113 = vld [vmem:[%s8 + $0x270] sm:$0xff]
    %v2114 = vld [vmem:[%s8 + $0x278] sm:$0xff]
    %v2115 = vld [vmem:[%s8 + $0x280] sm:$0xf]
    %v2116 = vld [vmem:[%s8 + $0x284] sm:$0xff]
    %v2117 = vld [vmem:[%s8 + $0x28c] sm:$0xff]
    %v2118 = vld [vmem:[%s8 + $0x294] sm:$0xff]
    %v2119 = vld [vmem:[%s8 + $0x29c] sm:$0xf]
    %v2120 = vld [vmem:[%s8 + $0x2a0] sm:$0xff]
    %v2121 = vld [vmem:[%s8 + $0x2a8] sm:$0xff]
    %v2122 = vld [vmem:[%s8 + $0x2b0] sm:$0xff]
    %v2123 = vld [vmem:[%s8 + $0x2b8] sm:$0xf]
    %v2124 = vld [vmem:[%s8 + $0x2bc] sm:$0xff]
    %v2125 = vld [vmem:[%s8 + $0x2c4] sm:$0xff]
    %v2126 = vld [vmem:[%s8 + $0x2cc] sm:$0xff]
    %v2127 = vld [vmem:[%s8 + $0x2d4] sm:$0xf]
    %v2128 = vld [vmem:[%s8 + $0x2d8] sm:$0xff]
    %v2129 = vld [vmem:[%s8 + $0x2e0] sm:$0xff]
    %v2130 = vld [vmem:[%s8 + $0x2e8] sm:$0xff]
    %v2131 = vld [vmem:[%s8 + $0x2f0] sm:$0xf]
    %v2132 = vld [vmem:[%s8 + $0x2f4] sm:$0xff]
    %v2133 = vld [vmem:[%s8 + $0x2fc] sm:$0xff]
    %v2134 = vld [vmem:[%s8 + $0x304] sm:$0xff]
    %v2135 = vld [vmem:[%s8 + $0x30c] sm:$0xf]
    %v2136 = vld [vmem:[%s8 + $0x310] sm:$0xff]
    %v2137 = vld [vmem:[%s8 + $0x318] sm:$0xff]
    %v2138 = vld [vmem:[%s8 + $0x320] sm:$0xff]
    %v2139 = vld [vmem:[%s8 + $0x328] sm:$0xf]
    %v2140 = vld [vmem:[%s8 + $0x32c] sm:$0xff]
    %v2141 = vld [vmem:[%s8 + $0x334] sm:$0xff]
    %v2142 = vld [vmem:[%s8 + $0x33c] sm:$0xff]
    %v2143 = vld [vmem:[%s8 + $0x344] sm:$0xf]
    %v2144 = vld [vmem:[%s8 + $0x348] sm:$0xff]
    %v2145 = vld [vmem:[%s8 + $0x350] sm:$0xff]
    %v2146 = vld [vmem:[%s8 + $0x358] sm:$0xff]
    %v2147 = vld [vmem:[%s8 + $0x360] sm:$0xf]
    %v2148 = vld [vmem:[%s8 + $0x364] sm:$0xff]
    %v2149 = vld [vmem:[%s8 + $0x36c] sm:$0xff]
    %v2150 = vld [vmem:[%s8 + $0x374] sm:$0xff]
    %v2151 = vld [vmem:[%s8 + $0x37c] sm:$0xf]
    %v2152 = vld [vmem:[%s8 + $0x380] sm:$0xff]
    %v2153 = vld [vmem:[%s8 + $0x388] sm:$0xff]
    %v2154 = vld [vmem:[%s8 + $0x390] sm:$0xff]
    %v2155 = vld [vmem:[%s8 + $0x398] sm:$0xf]
    %v2156 = vld [vmem:[%s8 + $0x39c] sm:$0xff]
    %v2157 = vld [vmem:[%s8 + $0x3a4] sm:$0xff]
    %v2158 = vld [vmem:[%s8 + $0x3ac] sm:$0xff]
    %v2159 = vld [vmem:[%s8 + $0x3b4] sm:$0xf]
    %v2160 = vld [vmem:[%s8 + $0x3b8] sm:$0xff]
    %v2161 = vld [vmem:[%s8 + $0x3c0] sm:$0xff]
    %v2162 = vld [vmem:[%s8 + $0x3c8] sm:$0xff]
    %v2163 = vld [vmem:[%s8 + $0x3d0] sm:$0xf]
    %v2164 = vld [vmem:[%s8 + $0x3d4] sm:$0xff]
    %v2165 = vld [vmem:[%s8 + $0x3dc] sm:$0xff]
    %v2166 = vld [vmem:[%s8 + $0x3e4] sm:$0xff]
    %v2167 = vld [vmem:[%s8 + $0x3ec] sm:$0xf]
    %v2168 = vld [vmem:[%s8 + $0x3f0] sm:$0xff]
    %v2169 = vld [vmem:[%s8 + $0x3f8] sm:$0xff]
    %v2170 = vld [vmem:[%s8 + $0x400] sm:$0xff]
    %v2171 = vld [vmem:[%s8 + $0x408] sm:$0xf]
    %v2172 = vld [vmem:[%s8 + $0x40c] sm:$0xff]
    %v2173 = vld [vmem:[%s8 + $0x414] sm:$0xff]
    %v2174 = vld [vmem:[%s8 + $0x41c] sm:$0xff]
    %v2175 = vld [vmem:[%s8 + $0x424] sm:$0xf]
    %v2176 = vld [vmem:[%s8 + $0x428] sm:$0xff]
    %v2177 = vld [vmem:[%s8 + $0x430] sm:$0xff]
    %v2178 = vld [vmem:[%s8 + $0x438] sm:$0xff]
    %v2179 = vld [vmem:[%s8 + $0x440] sm:$0xf]
    %v2180 = vld [vmem:[%s8 + $0x444] sm:$0xff]
    %v2181 = vld [vmem:[%s8 + $0x44c] sm:$0xff]
    %v2182 = vld [vmem:[%s8 + $0x454] sm:$0xff]
    %v2183 = vld [vmem:[%s8 + $0x45c] sm:$0xf]
    %v2184 = vld [vmem:[%s8 + $0x460] sm:$0xff]
    %v2185 = vld [vmem:[%s8 + $0x468] sm:$0xff]
    %v2186 = vld [vmem:[%s8 + $0x470] sm:$0xff]
    %v2187 = vld [vmem:[%s8 + $0x478] sm:$0xf]
    %v2188 = vld [vmem:[%s8 + $0x47c] sm:$0xff]
    %v2189 = vld [vmem:[%s8 + $0x484] sm:$0xff]
    %v2190 = vld [vmem:[%s8 + $0x48c] sm:$0xff]
    %v2191 = vld [vmem:[%s8 + $0x494] sm:$0xf]
    %v2192 = vld [vmem:[%s8 + $0x498] sm:$0xff]
    %v2193 = vld [vmem:[%s8 + $0x4a0] sm:$0xff]
    %v2194 = vld [vmem:[%s8 + $0x4a8] sm:$0xff]
    %v2195 = vld [vmem:[%s8 + $0x4b0] sm:$0xf]
    %v2196 = vld [vmem:[%s8 + $0x4b4] sm:$0xff]
    %v2197 = vld [vmem:[%s8 + $0x4bc] sm:$0xff]
    %v2198 = vld [vmem:[%s8 + $0x4c4] sm:$0xff]
    %v2199 = vld [vmem:[%s8 + $0x4cc] sm:$0xf]
    %v2200 = vld [vmem:[%s8 + $0x4d0] sm:$0xff]
    %v2201 = vld [vmem:[%s8 + $0x4d8] sm:$0xff]
    %v2202 = vld [vmem:[%s8 + $0x4e0] sm:$0xff]
    %v2203 = vld [vmem:[%s8 + $0x4e8] sm:$0xf]
    %v2204 = vld [vmem:[%s8 + $0x4ec] sm:$0xff]
    %v2205 = vld [vmem:[%s8 + $0x4f4] sm:$0xff]
    %v2206 = vld [vmem:[%s8 + $0x4fc] sm:$0xff]
    %v2207 = vld [vmem:[%s8 + $0x504] sm:$0xf]
    %v2208 = vld [vmem:[%s8 + $0x508] sm:$0xff]
    %v2209 = vld [vmem:[%s8 + $0x510] sm:$0xff]
    %v2210 = vld [vmem:[%s8 + $0x518] sm:$0xff]
    %v2211 = vld [vmem:[%s8 + $0x520] sm:$0xf]
    %v2212 = vld [vmem:[%s8 + $0x524] sm:$0xff]
    %v2213 = vld [vmem:[%s8 + $0x52c] sm:$0xff]
    %v2214 = vld [vmem:[%s8 + $0x534] sm:$0xff]
    %v2215 = vld [vmem:[%s8 + $0x53c] sm:$0xf]
    %v2216 = vld [vmem:[%s8 + $0x540] sm:$0xff]
    %v2217 = vld [vmem:[%s8 + $0x548] sm:$0xff]
    %v2218 = vld [vmem:[%s8 + $0x550] sm:$0xff]
    %v2219 = vld [vmem:[%s8 + $0x558] sm:$0xf]
    %v2220 = vld [vmem:[%s8 + $0x55c] sm:$0xff]
    %v2221 = vld [vmem:[%s8 + $0x564] sm:$0xff]
    %v2222 = vld [vmem:[%s8 + $0x56c] sm:$0xff]
    %v2223 = vld [vmem:[%s8 + $0x574] sm:$0xf]
    %v2224 = vld [vmem:[%s9] sm:$0x7f]
    %v2226 = vperm.slane %v2224, 0
    %v2227 = vperm.slane %v2224, 1
    %v2228 = vperm.slane %v2224, 2
    %v2229 = vperm.slane %v2224, 3
    %v2230 = vperm.slane %v2224, 4
    %v2231 = vperm.slane %v2224, 5
    %v2232 = vperm.slane %v2224, 6
    %v2440 = vunpack.c.l.b16 %v2024
    %v2441 = vunpack.c.h.b16 %v2024
    %v2442 = vunpack.c.l.b16 %v2025
    %v2443 = vunpack.c.h.b16 %v2025
    %v2444 = vunpack.c.l.b16 %v2026
    %v2445 = vunpack.c.h.b16 %v2026
    %v2446 = vunpack.c.l.b16 %v2027
    %v2447 = vunpack.c.l.b16 %v2028
    %v2448 = vunpack.c.h.b16 %v2028
    %v2449 = vunpack.c.l.b16 %v2029
    %v2450 = vunpack.c.h.b16 %v2029
    %v2451 = vunpack.c.l.b16 %v2030
    %v2452 = vunpack.c.h.b16 %v2030
    %v2453 = vunpack.c.l.b16 %v2031
    %v2454 = vunpack.c.l.b16 %v2032
    %v2455 = vunpack.c.h.b16 %v2032
    %v2456 = vunpack.c.l.b16 %v2033
    %v2457 = vunpack.c.h.b16 %v2033
    %v2458 = vunpack.c.l.b16 %v2034
    %v2459 = vunpack.c.h.b16 %v2034
    %v2460 = vunpack.c.l.b16 %v2035
    %v2461 = vunpack.c.l.b16 %v2036
    %v2462 = vunpack.c.h.b16 %v2036
    %v2463 = vunpack.c.l.b16 %v2037
    %v2464 = vunpack.c.h.b16 %v2037
    %v2465 = vunpack.c.l.b16 %v2038
    %v2466 = vunpack.c.h.b16 %v2038
    %v2467 = vunpack.c.l.b16 %v2039
    %v2468 = vunpack.c.l.b16 %v2040
    %v2469 = vunpack.c.h.b16 %v2040
    %v2470 = vunpack.c.l.b16 %v2041
    %v2471 = vunpack.c.h.b16 %v2041
    %v2472 = vunpack.c.l.b16 %v2042
    %v2473 = vunpack.c.h.b16 %v2042
    %v2474 = vunpack.c.l.b16 %v2043
    %v2475 = vunpack.c.l.b16 %v2044
    %v2476 = vunpack.c.h.b16 %v2044
    %v2477 = vunpack.c.l.b16 %v2045
    %v2478 = vunpack.c.h.b16 %v2045
    %v2479 = vunpack.c.l.b16 %v2046
    %v2480 = vunpack.c.h.b16 %v2046
    %v2481 = vunpack.c.l.b16 %v2047
    %v2482 = vunpack.c.l.b16 %v2048
    %v2483 = vunpack.c.h.b16 %v2048
    %v2484 = vunpack.c.l.b16 %v2049
    %v2485 = vunpack.c.h.b16 %v2049
    %v2486 = vunpack.c.l.b16 %v2050
    %v2487 = vunpack.c.h.b16 %v2050
    %v2488 = vunpack.c.l.b16 %v2051
    %v2489 = vunpack.c.l.b16 %v2052
    %v2490 = vunpack.c.h.b16 %v2052
    %v2491 = vunpack.c.l.b16 %v2053
    %v2492 = vunpack.c.h.b16 %v2053
    %v2493 = vunpack.c.l.b16 %v2054
    %v2494 = vunpack.c.h.b16 %v2054
    %v2495 = vunpack.c.l.b16 %v2055
    %v2496 = vunpack.c.l.b16 %v2056
    %v2497 = vunpack.c.h.b16 %v2056
    %v2498 = vunpack.c.l.b16 %v2057
    %v2499 = vunpack.c.h.b16 %v2057
    %v2500 = vunpack.c.l.b16 %v2058
    %v2501 = vunpack.c.h.b16 %v2058
    %v2502 = vunpack.c.l.b16 %v2059
    %v2503 = vunpack.c.l.b16 %v2060
    %v2504 = vunpack.c.h.b16 %v2060
    %v2505 = vunpack.c.l.b16 %v2061
    %v2506 = vunpack.c.h.b16 %v2061
    %v2507 = vunpack.c.l.b16 %v2062
    %v2508 = vunpack.c.h.b16 %v2062
    %v2509 = vunpack.c.l.b16 %v2063
    %v2510 = vunpack.c.l.b16 %v2064
    %v2511 = vunpack.c.h.b16 %v2064
    %v2512 = vunpack.c.l.b16 %v2065
    %v2513 = vunpack.c.h.b16 %v2065
    %v2514 = vunpack.c.l.b16 %v2066
    %v2515 = vunpack.c.h.b16 %v2066
    %v2516 = vunpack.c.l.b16 %v2067
    %v2517 = vunpack.c.l.b16 %v2068
    %v2518 = vunpack.c.h.b16 %v2068
    %v2519 = vunpack.c.l.b16 %v2069
    %v2520 = vunpack.c.h.b16 %v2069
    %v2521 = vunpack.c.l.b16 %v2070
    %v2522 = vunpack.c.h.b16 %v2070
    %v2523 = vunpack.c.l.b16 %v2071
    %v2524 = vunpack.c.l.b16 %v2072
    %v2525 = vunpack.c.h.b16 %v2072
    %v2526 = vunpack.c.l.b16 %v2073
    %v2527 = vunpack.c.h.b16 %v2073
    %v2528 = vunpack.c.l.b16 %v2074
    %v2529 = vunpack.c.h.b16 %v2074
    %v2530 = vunpack.c.l.b16 %v2075
    %v2531 = vunpack.c.l.b16 %v2076
    %v2532 = vunpack.c.h.b16 %v2076
    %v2533 = vunpack.c.l.b16 %v2077
    %v2534 = vunpack.c.h.b16 %v2077
    %v2535 = vunpack.c.l.b16 %v2078
    %v2536 = vunpack.c.h.b16 %v2078
    %v2537 = vunpack.c.l.b16 %v2079
    %v2538 = vunpack.c.l.b16 %v2080
    %v2539 = vunpack.c.h.b16 %v2080
    %v2540 = vunpack.c.l.b16 %v2081
    %v2541 = vunpack.c.h.b16 %v2081
    %v2542 = vunpack.c.l.b16 %v2082
    %v2543 = vunpack.c.h.b16 %v2082
    %v2544 = vunpack.c.l.b16 %v2083
    %v2545 = vunpack.c.l.b16 %v2084
    %v2546 = vunpack.c.h.b16 %v2084
    %v2547 = vunpack.c.l.b16 %v2085
    %v2548 = vunpack.c.h.b16 %v2085
    %v2549 = vunpack.c.l.b16 %v2086
    %v2550 = vunpack.c.h.b16 %v2086
    %v2551 = vunpack.c.l.b16 %v2087
    %v2552 = vunpack.c.l.b16 %v2088
    %v2553 = vunpack.c.h.b16 %v2088
    %v2554 = vunpack.c.l.b16 %v2089
    %v2555 = vunpack.c.h.b16 %v2089
    %v2556 = vunpack.c.l.b16 %v2090
    %v2557 = vunpack.c.h.b16 %v2090
    %v2558 = vunpack.c.l.b16 %v2091
    %v2559 = vunpack.c.l.b16 %v2092
    %v2560 = vunpack.c.h.b16 %v2092
    %v2561 = vunpack.c.l.b16 %v2093
    %v2562 = vunpack.c.h.b16 %v2093
    %v2563 = vunpack.c.l.b16 %v2094
    %v2564 = vunpack.c.h.b16 %v2094
    %v2565 = vunpack.c.l.b16 %v2095
    %v2566 = vunpack.c.l.b16 %v2096
    %v2567 = vunpack.c.h.b16 %v2096
    %v2568 = vunpack.c.l.b16 %v2097
    %v2569 = vunpack.c.h.b16 %v2097
    %v2570 = vunpack.c.l.b16 %v2098
    %v2571 = vunpack.c.h.b16 %v2098
    %v2572 = vunpack.c.l.b16 %v2099
    %v2573 = vunpack.c.l.b16 %v2100
    %v2574 = vunpack.c.h.b16 %v2100
    %v2575 = vunpack.c.l.b16 %v2101
    %v2576 = vunpack.c.h.b16 %v2101
    %v2577 = vunpack.c.l.b16 %v2102
    %v2578 = vunpack.c.h.b16 %v2102
    %v2579 = vunpack.c.l.b16 %v2103
    %v2580 = vunpack.c.l.b16 %v2104
    %v2581 = vunpack.c.h.b16 %v2104
    %v2582 = vunpack.c.l.b16 %v2105
    %v2583 = vunpack.c.h.b16 %v2105
    %v2584 = vunpack.c.l.b16 %v2106
    %v2585 = vunpack.c.h.b16 %v2106
    %v2586 = vunpack.c.l.b16 %v2107
    %v2587 = vunpack.c.l.b16 %v2108
    %v2588 = vunpack.c.h.b16 %v2108
    %v2589 = vunpack.c.l.b16 %v2109
    %v2590 = vunpack.c.h.b16 %v2109
    %v2591 = vunpack.c.l.b16 %v2110
    %v2592 = vunpack.c.h.b16 %v2110
    %v2593 = vunpack.c.l.b16 %v2111
    %v2594 = vunpack.c.l.b16 %v2112
    %v2595 = vunpack.c.h.b16 %v2112
    %v2596 = vunpack.c.l.b16 %v2113
    %v2597 = vunpack.c.h.b16 %v2113
    %v2598 = vunpack.c.l.b16 %v2114
    %v2599 = vunpack.c.h.b16 %v2114
    %v2600 = vunpack.c.l.b16 %v2115
    %v2601 = vunpack.c.l.b16 %v2116
    %v2602 = vunpack.c.h.b16 %v2116
    %v2603 = vunpack.c.l.b16 %v2117
    %v2604 = vunpack.c.h.b16 %v2117
    %v2605 = vunpack.c.l.b16 %v2118
    %v2606 = vunpack.c.h.b16 %v2118
    %v2607 = vunpack.c.l.b16 %v2119
    %v2608 = vunpack.c.l.b16 %v2120
    %v2609 = vunpack.c.h.b16 %v2120
    %v2610 = vunpack.c.l.b16 %v2121
    %v2611 = vunpack.c.h.b16 %v2121
    %v2612 = vunpack.c.l.b16 %v2122
    %v2613 = vunpack.c.h.b16 %v2122
    %v2614 = vunpack.c.l.b16 %v2123
    %v2615 = vunpack.c.l.b16 %v2124
    %v2616 = vunpack.c.h.b16 %v2124
    %v2617 = vunpack.c.l.b16 %v2125
    %v2618 = vunpack.c.h.b16 %v2125
    %v2619 = vunpack.c.l.b16 %v2126
    %v2620 = vunpack.c.h.b16 %v2126
    %v2621 = vunpack.c.l.b16 %v2127
    %v2622 = vunpack.c.l.b16 %v2128
    %v2623 = vunpack.c.h.b16 %v2128
    %v2624 = vunpack.c.l.b16 %v2129
    %v2625 = vunpack.c.h.b16 %v2129
    %v2626 = vunpack.c.l.b16 %v2130
    %v2627 = vunpack.c.h.b16 %v2130
    %v2628 = vunpack.c.l.b16 %v2131
    %v2629 = vunpack.c.l.b16 %v2132
    %v2630 = vunpack.c.h.b16 %v2132
    %v2631 = vunpack.c.l.b16 %v2133
    %v2632 = vunpack.c.h.b16 %v2133
    %v2633 = vunpack.c.l.b16 %v2134
    %v2634 = vunpack.c.h.b16 %v2134
    %v2635 = vunpack.c.l.b16 %v2135
    %v2636 = vunpack.c.l.b16 %v2136
    %v2637 = vunpack.c.h.b16 %v2136
    %v2638 = vunpack.c.l.b16 %v2137
    %v2639 = vunpack.c.h.b16 %v2137
    %v2640 = vunpack.c.l.b16 %v2138
    %v2641 = vunpack.c.h.b16 %v2138
    %v2642 = vunpack.c.l.b16 %v2139
    %v2643 = vunpack.c.l.b16 %v2140
    %v2644 = vunpack.c.h.b16 %v2140
    %v2645 = vunpack.c.l.b16 %v2141
    %v2646 = vunpack.c.h.b16 %v2141
    %v2647 = vunpack.c.l.b16 %v2142
    %v2648 = vunpack.c.h.b16 %v2142
    %v2649 = vunpack.c.l.b16 %v2143
    %v2650 = vunpack.c.l.b16 %v2144
    %v2651 = vunpack.c.h.b16 %v2144
    %v2652 = vunpack.c.l.b16 %v2145
    %v2653 = vunpack.c.h.b16 %v2145
    %v2654 = vunpack.c.l.b16 %v2146
    %v2655 = vunpack.c.h.b16 %v2146
    %v2656 = vunpack.c.l.b16 %v2147
    %v2657 = vunpack.c.l.b16 %v2148
    %v2658 = vunpack.c.h.b16 %v2148
    %v2659 = vunpack.c.l.b16 %v2149
    %v2660 = vunpack.c.h.b16 %v2149
    %v2661 = vunpack.c.l.b16 %v2150
    %v2662 = vunpack.c.h.b16 %v2150
    %v2663 = vunpack.c.l.b16 %v2151
    %v2664 = vunpack.c.l.b16 %v2152
    %v2665 = vunpack.c.h.b16 %v2152
    %v2666 = vunpack.c.l.b16 %v2153
    %v2667 = vunpack.c.h.b16 %v2153
    %v2668 = vunpack.c.l.b16 %v2154
    %v2669 = vunpack.c.h.b16 %v2154
    %v2670 = vunpack.c.l.b16 %v2155
    %v2671 = vunpack.c.l.b16 %v2156
    %v2672 = vunpack.c.h.b16 %v2156
    %v2673 = vunpack.c.l.b16 %v2157
    %v2674 = vunpack.c.h.b16 %v2157
    %v2675 = vunpack.c.l.b16 %v2158
    %v2676 = vunpack.c.h.b16 %v2158
    %v2677 = vunpack.c.l.b16 %v2159
    %v2678 = vunpack.c.l.b16 %v2160
    %v2679 = vunpack.c.h.b16 %v2160
    %v2680 = vunpack.c.l.b16 %v2161
    %v2681 = vunpack.c.h.b16 %v2161
    %v2682 = vunpack.c.l.b16 %v2162
    %v2683 = vunpack.c.h.b16 %v2162
    %v2684 = vunpack.c.l.b16 %v2163
    %v2685 = vunpack.c.l.b16 %v2164
    %v2686 = vunpack.c.h.b16 %v2164
    %v2687 = vunpack.c.l.b16 %v2165
    %v2688 = vunpack.c.h.b16 %v2165
    %v2689 = vunpack.c.l.b16 %v2166
    %v2690 = vunpack.c.h.b16 %v2166
    %v2691 = vunpack.c.l.b16 %v2167
    %v2692 = vunpack.c.l.b16 %v2168
    %v2693 = vunpack.c.h.b16 %v2168
    %v2694 = vunpack.c.l.b16 %v2169
    %v2695 = vunpack.c.h.b16 %v2169
    %v2696 = vunpack.c.l.b16 %v2170
    %v2697 = vunpack.c.h.b16 %v2170
    %v2698 = vunpack.c.l.b16 %v2171
    %v2699 = vunpack.c.l.b16 %v2172
    %v2700 = vunpack.c.h.b16 %v2172
    %v2701 = vunpack.c.l.b16 %v2173
    %v2702 = vunpack.c.h.b16 %v2173
    %v2703 = vunpack.c.l.b16 %v2174
    %v2704 = vunpack.c.h.b16 %v2174
    %v2705 = vunpack.c.l.b16 %v2175
    %v2706 = vunpack.c.l.b16 %v2176
    %v2707 = vunpack.c.h.b16 %v2176
    %v2708 = vunpack.c.l.b16 %v2177
    %v2709 = vunpack.c.h.b16 %v2177
    %v2710 = vunpack.c.l.b16 %v2178
    %v2711 = vunpack.c.h.b16 %v2178
    %v2712 = vunpack.c.l.b16 %v2179
    %v2713 = vunpack.c.l.b16 %v2180
    %v2714 = vunpack.c.h.b16 %v2180
    %v2715 = vunpack.c.l.b16 %v2181
    %v2716 = vunpack.c.h.b16 %v2181
    %v2717 = vunpack.c.l.b16 %v2182
    %v2718 = vunpack.c.h.b16 %v2182
    %v2719 = vunpack.c.l.b16 %v2183
    %v2720 = vunpack.c.l.b16 %v2184
    %v2721 = vunpack.c.h.b16 %v2184
    %v2722 = vunpack.c.l.b16 %v2185
    %v2723 = vunpack.c.h.b16 %v2185
    %v2724 = vunpack.c.l.b16 %v2186
    %v2725 = vunpack.c.h.b16 %v2186
    %v2726 = vunpack.c.l.b16 %v2187
    %v2727 = vunpack.c.l.b16 %v2188
    %v2728 = vunpack.c.h.b16 %v2188
    %v2729 = vunpack.c.l.b16 %v2189
    %v2730 = vunpack.c.h.b16 %v2189
    %v2731 = vunpack.c.l.b16 %v2190
    %v2732 = vunpack.c.h.b16 %v2190
    %v2733 = vunpack.c.l.b16 %v2191
    %v2734 = vunpack.c.l.b16 %v2192
    %v2735 = vunpack.c.h.b16 %v2192
    %v2736 = vunpack.c.l.b16 %v2193
    %v2737 = vunpack.c.h.b16 %v2193
    %v2738 = vunpack.c.l.b16 %v2194
    %v2739 = vunpack.c.h.b16 %v2194
    %v2740 = vunpack.c.l.b16 %v2195
    %v2741 = vunpack.c.l.b16 %v2196
    %v2742 = vunpack.c.h.b16 %v2196
    %v2743 = vunpack.c.l.b16 %v2197
    %v2744 = vunpack.c.h.b16 %v2197
    %v2745 = vunpack.c.l.b16 %v2198
    %v2746 = vunpack.c.h.b16 %v2198
    %v2747 = vunpack.c.l.b16 %v2199
    %v2748 = vunpack.c.l.b16 %v2200
    %v2749 = vunpack.c.h.b16 %v2200
    %v2750 = vunpack.c.l.b16 %v2201
    %v2751 = vunpack.c.h.b16 %v2201
    %v2752 = vunpack.c.l.b16 %v2202
    %v2753 = vunpack.c.h.b16 %v2202
    %v2754 = vunpack.c.l.b16 %v2203
    %v2755 = vunpack.c.l.b16 %v2204
    %v2756 = vunpack.c.h.b16 %v2204
    %v2757 = vunpack.c.l.b16 %v2205
    %v2758 = vunpack.c.h.b16 %v2205
    %v2759 = vunpack.c.l.b16 %v2206
    %v2760 = vunpack.c.h.b16 %v2206
    %v2761 = vunpack.c.l.b16 %v2207
    %v2762 = vunpack.c.l.b16 %v2208
    %v2763 = vunpack.c.h.b16 %v2208
    %v2764 = vunpack.c.l.b16 %v2209
    %v2765 = vunpack.c.h.b16 %v2209
    %v2766 = vunpack.c.l.b16 %v2210
    %v2767 = vunpack.c.h.b16 %v2210
    %v2768 = vunpack.c.l.b16 %v2211
    %v2769 = vunpack.c.l.b16 %v2212
    %v2770 = vunpack.c.h.b16 %v2212
    %v2771 = vunpack.c.l.b16 %v2213
    %v2772 = vunpack.c.h.b16 %v2213
    %v2773 = vunpack.c.l.b16 %v2214
    %v2774 = vunpack.c.h.b16 %v2214
    %v2775 = vunpack.c.l.b16 %v2215
    %v2776 = vunpack.c.l.b16 %v2216
    %v2777 = vunpack.c.h.b16 %v2216
    %v2778 = vunpack.c.l.b16 %v2217
    %v2779 = vunpack.c.h.b16 %v2217
    %v2780 = vunpack.c.l.b16 %v2218
    %v2781 = vunpack.c.h.b16 %v2218
    %v2782 = vunpack.c.l.b16 %v2219
    %v2783 = vunpack.c.l.b16 %v2220
    %v2784 = vunpack.c.h.b16 %v2220
    %v2785 = vunpack.c.l.b16 %v2221
    %v2786 = vunpack.c.h.b16 %v2221
    %v2787 = vunpack.c.l.b16 %v2222
    %v2788 = vunpack.c.h.b16 %v2222
    %v2789 = vunpack.c.l.b16 %v2223
    %v2790 = vpack.c.b16 %v2447, %v2440
    %v2791 = vpack.c.b16 %v2448, %v2441
    %v2792 = vpack.c.b16 %v2449, %v2442
    %v2793 = vpack.c.b16 %v2450, %v2443
    %v2794 = vpack.c.b16 %v2451, %v2444
    %v2795 = vpack.c.b16 %v2452, %v2445
    %v2796 = vpack.c.b16 %v2453, %v2446
    %v2797 = vpack.c.b16 %v2461, %v2454
    %v2798 = vpack.c.b16 %v2462, %v2455
    %v2799 = vpack.c.b16 %v2463, %v2456
    %v2800 = vpack.c.b16 %v2464, %v2457
    %v2801 = vpack.c.b16 %v2465, %v2458
    %v2802 = vpack.c.b16 %v2466, %v2459
    %v2803 = vpack.c.b16 %v2467, %v2460
    %v2804 = vpack.c.b16 %v2475, %v2468
    %v2805 = vpack.c.b16 %v2476, %v2469
    %v2806 = vpack.c.b16 %v2477, %v2470
    %v2807 = vpack.c.b16 %v2478, %v2471
    %v2808 = vpack.c.b16 %v2479, %v2472
    %v2809 = vpack.c.b16 %v2480, %v2473
    %v2810 = vpack.c.b16 %v2481, %v2474
    %v2811 = vpack.c.b16 %v2489, %v2482
    %v2812 = vpack.c.b16 %v2490, %v2483
    %v2813 = vpack.c.b16 %v2491, %v2484
    %v2814 = vpack.c.b16 %v2492, %v2485
    %v2815 = vpack.c.b16 %v2493, %v2486
    %v2816 = vpack.c.b16 %v2494, %v2487
    %v2817 = vpack.c.b16 %v2495, %v2488
    %v2818 = vpack.c.b16 %v2503, %v2496
    %v2819 = vpack.c.b16 %v2504, %v2497
    %v2820 = vpack.c.b16 %v2505, %v2498
    %v2821 = vpack.c.b16 %v2506, %v2499
    %v2822 = vpack.c.b16 %v2507, %v2500
    %v2823 = vpack.c.b16 %v2508, %v2501
    %v2824 = vpack.c.b16 %v2509, %v2502
    %v2825 = vpack.c.b16 %v2517, %v2510
    %v2826 = vpack.c.b16 %v2518, %v2511
    %v2827 = vpack.c.b16 %v2519, %v2512
    %v2828 = vpack.c.b16 %v2520, %v2513
    %v2829 = vpack.c.b16 %v2521, %v2514
    %v2830 = vpack.c.b16 %v2522, %v2515
    %v2831 = vpack.c.b16 %v2523, %v2516
    %v2832 = vpack.c.b16 %v2531, %v2524
    %v2833 = vpack.c.b16 %v2532, %v2525
    %v2834 = vpack.c.b16 %v2533, %v2526
    %v2835 = vpack.c.b16 %v2534, %v2527
    %v2836 = vpack.c.b16 %v2535, %v2528
    %v2837 = vpack.c.b16 %v2536, %v2529
    %v2838 = vpack.c.b16 %v2537, %v2530
    %v2839 = vpack.c.b16 %v2545, %v2538
    %v2840 = vpack.c.b16 %v2546, %v2539
    %v2841 = vpack.c.b16 %v2547, %v2540
    %v2842 = vpack.c.b16 %v2548, %v2541
    %v2843 = vpack.c.b16 %v2549, %v2542
    %v2844 = vpack.c.b16 %v2550, %v2543
    %v2845 = vpack.c.b16 %v2551, %v2544
    %v2846 = vpack.c.b16 %v2559, %v2552
    %v2847 = vpack.c.b16 %v2560, %v2553
    %v2848 = vpack.c.b16 %v2561, %v2554
    %v2849 = vpack.c.b16 %v2562, %v2555
    %v2850 = vpack.c.b16 %v2563, %v2556
    %v2851 = vpack.c.b16 %v2564, %v2557
    %v2852 = vpack.c.b16 %v2565, %v2558
    %v2853 = vpack.c.b16 %v2573, %v2566
    %v2854 = vpack.c.b16 %v2574, %v2567
    %v2855 = vpack.c.b16 %v2575, %v2568
    %v2856 = vpack.c.b16 %v2576, %v2569
    %v2857 = vpack.c.b16 %v2577, %v2570
    %v2858 = vpack.c.b16 %v2578, %v2571
    %v2859 = vpack.c.b16 %v2579, %v2572
    %v2860 = vpack.c.b16 %v2587, %v2580
    %v2861 = vpack.c.b16 %v2588, %v2581
    %v2862 = vpack.c.b16 %v2589, %v2582
    %v2863 = vpack.c.b16 %v2590, %v2583
    %v2864 = vpack.c.b16 %v2591, %v2584
    %v2865 = vpack.c.b16 %v2592, %v2585
    %v2866 = vpack.c.b16 %v2593, %v2586
    %v2867 = vpack.c.b16 %v2601, %v2594
    %v2868 = vpack.c.b16 %v2602, %v2595
    %v2869 = vpack.c.b16 %v2603, %v2596
    %v2870 = vpack.c.b16 %v2604, %v2597
    %v2871 = vpack.c.b16 %v2605, %v2598
    %v2872 = vpack.c.b16 %v2606, %v2599
    %v2873 = vpack.c.b16 %v2607, %v2600
    %v2874 = vpack.c.b16 %v2615, %v2608
    %v2875 = vpack.c.b16 %v2616, %v2609
    %v2876 = vpack.c.b16 %v2617, %v2610
    %v2877 = vpack.c.b16 %v2618, %v2611
    %v2878 = vpack.c.b16 %v2619, %v2612
    %v2879 = vpack.c.b16 %v2620, %v2613
    %v2880 = vpack.c.b16 %v2621, %v2614
    %v2881 = vpack.c.b16 %v2629, %v2622
    %v2882 = vpack.c.b16 %v2630, %v2623
    %v2883 = vpack.c.b16 %v2631, %v2624
    %v2884 = vpack.c.b16 %v2632, %v2625
    %v2885 = vpack.c.b16 %v2633, %v2626
    %v2886 = vpack.c.b16 %v2634, %v2627
    %v2887 = vpack.c.b16 %v2635, %v2628
    %v2888 = vpack.c.b16 %v2643, %v2636
    %v2889 = vpack.c.b16 %v2644, %v2637
    %v2890 = vpack.c.b16 %v2645, %v2638
    %v2891 = vpack.c.b16 %v2646, %v2639
    %v2892 = vpack.c.b16 %v2647, %v2640
    %v2893 = vpack.c.b16 %v2648, %v2641
    %v2894 = vpack.c.b16 %v2649, %v2642
    %v2895 = vpack.c.b16 %v2657, %v2650
    %v2896 = vpack.c.b16 %v2658, %v2651
    %v2897 = vpack.c.b16 %v2659, %v2652
    %v2898 = vpack.c.b16 %v2660, %v2653
    %v2899 = vpack.c.b16 %v2661, %v2654
    %v2900 = vpack.c.b16 %v2662, %v2655
    %v2901 = vpack.c.b16 %v2663, %v2656
    %v2902 = vpack.c.b16 %v2671, %v2664
    %v2903 = vpack.c.b16 %v2672, %v2665
    %v2904 = vpack.c.b16 %v2673, %v2666
    %v2905 = vpack.c.b16 %v2674, %v2667
    %v2906 = vpack.c.b16 %v2675, %v2668
    %v2907 = vpack.c.b16 %v2676, %v2669
    %v2908 = vpack.c.b16 %v2677, %v2670
    %v2909 = vpack.c.b16 %v2685, %v2678
    %v2910 = vpack.c.b16 %v2686, %v2679
    %v2911 = vpack.c.b16 %v2687, %v2680
    %v2912 = vpack.c.b16 %v2688, %v2681
    %v2913 = vpack.c.b16 %v2689, %v2682
    %v2914 = vpack.c.b16 %v2690, %v2683
    %v2915 = vpack.c.b16 %v2691, %v2684
    %v2916 = vpack.c.b16 %v2699, %v2692
    %v2917 = vpack.c.b16 %v2700, %v2693
    %v2918 = vpack.c.b16 %v2701, %v2694
    %v2919 = vpack.c.b16 %v2702, %v2695
    %v2920 = vpack.c.b16 %v2703, %v2696
    %v2921 = vpack.c.b16 %v2704, %v2697
    %v2922 = vpack.c.b16 %v2705, %v2698
    %v2923 = vpack.c.b16 %v2713, %v2706
    %v2924 = vpack.c.b16 %v2714, %v2707
    %v2925 = vpack.c.b16 %v2715, %v2708
    %v2926 = vpack.c.b16 %v2716, %v2709
    %v2927 = vpack.c.b16 %v2717, %v2710
    %v2928 = vpack.c.b16 %v2718, %v2711
    %v2929 = vpack.c.b16 %v2719, %v2712
    %v2930 = vpack.c.b16 %v2727, %v2720
    %v2931 = vpack.c.b16 %v2728, %v2721
    %v2932 = vpack.c.b16 %v2729, %v2722
    %v2933 = vpack.c.b16 %v2730, %v2723
    %v2934 = vpack.c.b16 %v2731, %v2724
    %v2935 = vpack.c.b16 %v2732, %v2725
    %v2936 = vpack.c.b16 %v2733, %v2726
    %v2937 = vpack.c.b16 %v2741, %v2734
    %v2938 = vpack.c.b16 %v2742, %v2735
    %v2939 = vpack.c.b16 %v2743, %v2736
    %v2940 = vpack.c.b16 %v2744, %v2737
    %v2941 = vpack.c.b16 %v2745, %v2738
    %v2942 = vpack.c.b16 %v2746, %v2739
    %v2943 = vpack.c.b16 %v2747, %v2740
    %v2944 = vpack.c.b16 %v2755, %v2748
    %v2945 = vpack.c.b16 %v2756, %v2749
    %v2946 = vpack.c.b16 %v2757, %v2750
    %v2947 = vpack.c.b16 %v2758, %v2751
    %v2948 = vpack.c.b16 %v2759, %v2752
    %v2949 = vpack.c.b16 %v2760, %v2753
    %v2950 = vpack.c.b16 %v2761, %v2754
    %v2951 = vpack.c.b16 %v2769, %v2762
    %v2952 = vpack.c.b16 %v2770, %v2763
    %v2953 = vpack.c.b16 %v2771, %v2764
    %v2954 = vpack.c.b16 %v2772, %v2765
    %v2955 = vpack.c.b16 %v2773, %v2766
    %v2956 = vpack.c.b16 %v2774, %v2767
    %v2957 = vpack.c.b16 %v2775, %v2768
    %v2958 = vpack.c.b16 %v2783, %v2776
    %v2959 = vpack.c.b16 %v2784, %v2777
    %v2960 = vpack.c.b16 %v2785, %v2778
    %v2961 = vpack.c.b16 %v2786, %v2779
    %v2962 = vpack.c.b16 %v2787, %v2780
    %v2963 = vpack.c.b16 %v2788, %v2781
    %v2964 = vpack.c.b16 %v2789, %v2782
    %v3141 = vsel %vm1255, %v2023, 0
    %3143 = vmatpush.bf16.msra.mxu0 %v2839
    %3144 = vmatpush.bf16.msra.mxu0 %v2832
    %3145 = vmatpush.bf16.msra.mxu0 %v2825
    %3146 = vmatpush.bf16.msra.mxu0 %v2818
    %3147 = vmatpush.bf16.msra.mxu0 %v2811
    %3148 = vmatpush.bf16.msra.mxu0 %v2804
    %3149 = vmatpush.bf16.msra.mxu0 %v2797
    %3150 = vmatpush.bf16.msra.mxu0 %v2790
    %3151 = vmatmul.bf16.gmra.mxu0 %v2020
    %v3152 = vpop.f32.mrf.mxu0
    %v3153 = vadd.f32 %v2226, %v3152
    %v3154 = vpop.f32.mrf.mxu0
    %3155 = vdwg.mxu0
    %3156 = vmatpush.bf16.msra.mxu0 %v2895
    %3157 = vmatpush.bf16.msra.mxu0 %v2888
    %3158 = vmatpush.bf16.msra.mxu0 %v2881
    %3159 = vmatpush.bf16.msra.mxu0 %v2874
    %3160 = vmatpush.bf16.msra.mxu0 %v2867
    %3161 = vmatpush.bf16.msra.mxu0 %v2860
    %3162 = vmatpush.bf16.msra.mxu0 %v2853
    %3163 = vmatpush.bf16.msra.mxu0 %v2846
    %3164 = vmatmul.bf16.gmra.mxu0 %v2021
    %v3165 = vpop.f32.mrf.mxu0
    %v3166 = vadd.f32 %v3153, %v3165
    %v3167 = vpop.f32.mrf.mxu0
    %3168 = vdwg.mxu0
    %3169 = vmatpush.bf16.msra.mxu0 %v2951
    %3170 = vmatpush.bf16.msra.mxu0 %v2944
    %3171 = vmatpush.bf16.msra.mxu0 %v2937
    %3172 = vmatpush.bf16.msra.mxu0 %v2930
    %3173 = vmatpush.bf16.msra.mxu0 %v2923
    %3174 = vmatpush.bf16.msra.mxu0 %v2916
    %3175 = vmatpush.bf16.msra.mxu0 %v2909
    %3176 = vmatpush.bf16.msra.mxu0 %v2902
    %3177 = vmatmul.bf16.gmra.mxu0 %v2022
    %v3178 = vpop.f32.mrf.mxu0
    %v3179 = vadd.f32 %v3166, %v3178
    %v3180 = vpop.f32.mrf.mxu0
    %3181 = vdwg.mxu0
    %3182 = vmatpush.bf16.msra.mxu0 0
    %3183 = vmatpush.bf16.msra.mxu0 0
    %3184 = vmatpush.bf16.msra.mxu0 0
    %3185 = vmatpush.bf16.msra.mxu0 0
    %3186 = vmatpush.bf16.msra.mxu0 0
    %3187 = vmatpush.bf16.msra.mxu0 0
    %3188 = vmatpush.bf16.msra.mxu0 0
    %3189 = vmatpush.bf16.msra.mxu0 %v2958
    %3190 = vmatmul.bf16.gmra.mxu0 %v3141
    %v3191 = vpop.f32.mrf.mxu0
    %v3192 = vadd.f32 %v3179, %v3191
    %v3193 = vpop.f32.mrf.mxu0
    %3194 = vdwg.mxu0
    %3195 = vmatpush.bf16.msra.mxu0 %v2840
    %3196 = vmatpush.bf16.msra.mxu0 %v2833
    %3197 = vmatpush.bf16.msra.mxu0 %v2826
    %3198 = vmatpush.bf16.msra.mxu0 %v2819
    %3199 = vmatpush.bf16.msra.mxu0 %v2812
    %3200 = vmatpush.bf16.msra.mxu0 %v2805
    %3201 = vmatpush.bf16.msra.mxu0 %v2798
    %3202 = vmatpush.bf16.msra.mxu0 %v2791
    %3203 = vmatmul.bf16.gmra.mxu0 %v2020
    %v3204 = vpop.f32.mrf.mxu0
    %v3205 = vadd.f32 %v2227, %v3204
    %v3206 = vpop.f32.mrf.mxu0
    %3207 = vdwg.mxu0
    %3208 = vmatpush.bf16.msra.mxu0 %v2896
    %3209 = vmatpush.bf16.msra.mxu0 %v2889
    %3210 = vmatpush.bf16.msra.mxu0 %v2882
    %3211 = vmatpush.bf16.msra.mxu0 %v2875
    %3212 = vmatpush.bf16.msra.mxu0 %v2868
    %3213 = vmatpush.bf16.msra.mxu0 %v2861
    %3214 = vmatpush.bf16.msra.mxu0 %v2854
    %3215 = vmatpush.bf16.msra.mxu0 %v2847
    %3216 = vmatmul.bf16.gmra.mxu0 %v2021
    %v3217 = vpop.f32.mrf.mxu0
    %v3218 = vadd.f32 %v3205, %v3217
    %v3219 = vpop.f32.mrf.mxu0
    %3220 = vdwg.mxu0
    %3221 = vmatpush.bf16.msra.mxu0 %v2952
    %3222 = vmatpush.bf16.msra.mxu0 %v2945
    %3223 = vmatpush.bf16.msra.mxu0 %v2938
    %3224 = vmatpush.bf16.msra.mxu0 %v2931
    %3225 = vmatpush.bf16.msra.mxu0 %v2924
    %3226 = vmatpush.bf16.msra.mxu0 %v2917
    %3227 = vmatpush.bf16.msra.mxu0 %v2910
    %3228 = vmatpush.bf16.msra.mxu0 %v2903
    %3229 = vmatmul.bf16.gmra.mxu0 %v2022
    %v3230 = vpop.f32.mrf.mxu0
    %v3231 = vadd.f32 %v3218, %v3230
    %v3232 = vpop.f32.mrf.mxu0
    %3233 = vdwg.mxu0
    %3234 = vmatpush.bf16.msra.mxu0 0
    %3235 = vmatpush.bf16.msra.mxu0 0
    %3236 = vmatpush.bf16.msra.mxu0 0
    %3237 = vmatpush.bf16.msra.mxu0 0
    %3238 = vmatpush.bf16.msra.mxu0 0
    %3239 = vmatpush.bf16.msra.mxu0 0
    %3240 = vmatpush.bf16.msra.mxu0 0
    %3241 = vmatpush.bf16.msra.mxu0 %v2959
    %3242 = vmatmul.bf16.gmra.mxu0 %v3141
    %v3243 = vpop.f32.mrf.mxu0
    %v3244 = vadd.f32 %v3231, %v3243
    %v3245 = vpop.f32.mrf.mxu0
    %3246 = vdwg.mxu0
    %3247 = vmatpush.bf16.msra.mxu0 %v2841
    %3248 = vmatpush.bf16.msra.mxu0 %v2834
    %3249 = vmatpush.bf16.msra.mxu0 %v2827
    %3250 = vmatpush.bf16.msra.mxu0 %v2820
    %3251 = vmatpush.bf16.msra.mxu0 %v2813
    %3252 = vmatpush.bf16.msra.mxu0 %v2806
    %3253 = vmatpush.bf16.msra.mxu0 %v2799
    %3254 = vmatpush.bf16.msra.mxu0 %v2792
    %3255 = vmatmul.bf16.gmra.mxu0 %v2020
    %v3256 = vpop.f32.mrf.mxu0
    %v3257 = vadd.f32 %v2228, %v3256
    %v3258 = vpop.f32.mrf.mxu0
    %3259 = vdwg.mxu0
    %3260 = vmatpush.bf16.msra.mxu0 %v2897
    %3261 = vmatpush.bf16.msra.mxu0 %v2890
    %3262 = vmatpush.bf16.msra.mxu0 %v2883
    %3263 = vmatpush.bf16.msra.mxu0 %v2876
    %3264 = vmatpush.bf16.msra.mxu0 %v2869
    %3265 = vmatpush.bf16.msra.mxu0 %v2862
    %3266 = vmatpush.bf16.msra.mxu0 %v2855
    %3267 = vmatpush.bf16.msra.mxu0 %v2848
    %3268 = vmatmul.bf16.gmra.mxu0 %v2021
    %v3269 = vpop.f32.mrf.mxu0
    %v3270 = vadd.f32 %v3257, %v3269
    %v3271 = vpop.f32.mrf.mxu0
    %3272 = vdwg.mxu0
    %3273 = vmatpush.bf16.msra.mxu0 %v2953
    %3274 = vmatpush.bf16.msra.mxu0 %v2946
    %3275 = vmatpush.bf16.msra.mxu0 %v2939
    %3276 = vmatpush.bf16.msra.mxu0 %v2932
    %3277 = vmatpush.bf16.msra.mxu0 %v2925
    %3278 = vmatpush.bf16.msra.mxu0 %v2918
    %3279 = vmatpush.bf16.msra.mxu0 %v2911
    %3280 = vmatpush.bf16.msra.mxu0 %v2904
    %3281 = vmatmul.bf16.gmra.mxu0 %v2022
    %v3282 = vpop.f32.mrf.mxu0
    %v3283 = vadd.f32 %v3270, %v3282
    %v3284 = vpop.f32.mrf.mxu0
    %3285 = vdwg.mxu0
    %3286 = vmatpush.bf16.msra.mxu0 0
    %3287 = vmatpush.bf16.msra.mxu0 0
    %3288 = vmatpush.bf16.msra.mxu0 0
    %3289 = vmatpush.bf16.msra.mxu0 0
    %3290 = vmatpush.bf16.msra.mxu0 0
    %3291 = vmatpush.bf16.msra.mxu0 0
    %3292 = vmatpush.bf16.msra.mxu0 0
    %3293 = vmatpush.bf16.msra.mxu0 %v2960
    %3294 = vmatmul.bf16.gmra.mxu0 %v3141
    %v3295 = vpop.f32.mrf.mxu0
    %v3296 = vadd.f32 %v3283, %v3295
    %v3297 = vpop.f32.mrf.mxu0
    %3298 = vdwg.mxu0
    %3299 = vmatpush.bf16.msra.mxu0 %v2842
    %3300 = vmatpush.bf16.msra.mxu0 %v2835
    %3301 = vmatpush.bf16.msra.mxu0 %v2828
    %3302 = vmatpush.bf16.msra.mxu0 %v2821
    %3303 = vmatpush.bf16.msra.mxu0 %v2814
    %3304 = vmatpush.bf16.msra.mxu0 %v2807
    %3305 = vmatpush.bf16.msra.mxu0 %v2800
    %3306 = vmatpush.bf16.msra.mxu0 %v2793
    %3307 = vmatmul.bf16.gmra.mxu0 %v2020
    %v3308 = vpop.f32.mrf.mxu0
    %v3309 = vadd.f32 %v2229, %v3308
    %v3310 = vpop.f32.mrf.mxu0
    %3311 = vdwg.mxu0
    %3312 = vmatpush.bf16.msra.mxu0 %v2898
    %3313 = vmatpush.bf16.msra.mxu0 %v2891
    %3314 = vmatpush.bf16.msra.mxu0 %v2884
    %3315 = vmatpush.bf16.msra.mxu0 %v2877
    %3316 = vmatpush.bf16.msra.mxu0 %v2870
    %3317 = vmatpush.bf16.msra.mxu0 %v2863
    %3318 = vmatpush.bf16.msra.mxu0 %v2856
    %3319 = vmatpush.bf16.msra.mxu0 %v2849
    %3320 = vmatmul.bf16.gmra.mxu0 %v2021
    %v3321 = vpop.f32.mrf.mxu0
    %v3322 = vadd.f32 %v3309, %v3321
    %v3323 = vpop.f32.mrf.mxu0
    %3324 = vdwg.mxu0
    %3325 = vmatpush.bf16.msra.mxu0 %v2954
    %3326 = vmatpush.bf16.msra.mxu0 %v2947
    %3327 = vmatpush.bf16.msra.mxu0 %v2940
    %3328 = vmatpush.bf16.msra.mxu0 %v2933
    %3329 = vmatpush.bf16.msra.mxu0 %v2926
    %3330 = vmatpush.bf16.msra.mxu0 %v2919
    %3331 = vmatpush.bf16.msra.mxu0 %v2912
    %3332 = vmatpush.bf16.msra.mxu0 %v2905
    %3333 = vmatmul.bf16.gmra.mxu0 %v2022
    %v3334 = vpop.f32.mrf.mxu0
    %v3335 = vadd.f32 %v3322, %v3334
    %v3336 = vpop.f32.mrf.mxu0
    %3337 = vdwg.mxu0
    %3338 = vmatpush.bf16.msra.mxu0 0
    %3339 = vmatpush.bf16.msra.mxu0 0
    %3340 = vmatpush.bf16.msra.mxu0 0
    %3341 = vmatpush.bf16.msra.mxu0 0
    %3342 = vmatpush.bf16.msra.mxu0 0
    %3343 = vmatpush.bf16.msra.mxu0 0
    %3344 = vmatpush.bf16.msra.mxu0 0
    %3345 = vmatpush.bf16.msra.mxu0 %v2961
    %3346 = vmatmul.bf16.gmra.mxu0 %v3141
    %v3347 = vpop.f32.mrf.mxu0
    %v3348 = vadd.f32 %v3335, %v3347
    %v3349 = vpop.f32.mrf.mxu0
    %3350 = vdwg.mxu0
    %3351 = vmatpush.bf16.msra.mxu0 %v2843
    %3352 = vmatpush.bf16.msra.mxu0 %v2836
    %3353 = vmatpush.bf16.msra.mxu0 %v2829
    %3354 = vmatpush.bf16.msra.mxu0 %v2822
    %3355 = vmatpush.bf16.msra.mxu0 %v2815
    %3356 = vmatpush.bf16.msra.mxu0 %v2808
    %3357 = vmatpush.bf16.msra.mxu0 %v2801
    %3358 = vmatpush.bf16.msra.mxu0 %v2794
    %3359 = vmatmul.bf16.gmra.mxu0 %v2020
    %v3360 = vpop.f32.mrf.mxu0
    %v3361 = vadd.f32 %v2230, %v3360
    %v3362 = vpop.f32.mrf.mxu0
    %3363 = vdwg.mxu0
    %3364 = vmatpush.bf16.msra.mxu0 %v2899
    %3365 = vmatpush.bf16.msra.mxu0 %v2892
    %3366 = vmatpush.bf16.msra.mxu0 %v2885
    %3367 = vmatpush.bf16.msra.mxu0 %v2878
    %3368 = vmatpush.bf16.msra.mxu0 %v2871
    %3369 = vmatpush.bf16.msra.mxu0 %v2864
    %3370 = vmatpush.bf16.msra.mxu0 %v2857
    %3371 = vmatpush.bf16.msra.mxu0 %v2850
    %3372 = vmatmul.bf16.gmra.mxu0 %v2021
    %v3373 = vpop.f32.mrf.mxu0
    %v3374 = vadd.f32 %v3361, %v3373
    %v3375 = vpop.f32.mrf.mxu0
    %3376 = vdwg.mxu0
    %3377 = vmatpush.bf16.msra.mxu0 %v2955
    %3378 = vmatpush.bf16.msra.mxu0 %v2948
    %3379 = vmatpush.bf16.msra.mxu0 %v2941
    %3380 = vmatpush.bf16.msra.mxu0 %v2934
    %3381 = vmatpush.bf16.msra.mxu0 %v2927
    %3382 = vmatpush.bf16.msra.mxu0 %v2920
    %3383 = vmatpush.bf16.msra.mxu0 %v2913
    %3384 = vmatpush.bf16.msra.mxu0 %v2906
    %3385 = vmatmul.bf16.gmra.mxu0 %v2022
    %v3386 = vpop.f32.mrf.mxu0
    %v3387 = vadd.f32 %v3374, %v3386
    %v3388 = vpop.f32.mrf.mxu0
    %3389 = vdwg.mxu0
    %3390 = vmatpush.bf16.msra.mxu0 0
    %3391 = vmatpush.bf16.msra.mxu0 0
    %3392 = vmatpush.bf16.msra.mxu0 0
    %3393 = vmatpush.bf16.msra.mxu0 0
    %3394 = vmatpush.bf16.msra.mxu0 0
    %3395 = vmatpush.bf16.msra.mxu0 0
    %3396 = vmatpush.bf16.msra.mxu0 0
    %3397 = vmatpush.bf16.msra.mxu0 %v2962
    %3398 = vmatmul.bf16.gmra.mxu0 %v3141
    %v3399 = vpop.f32.mrf.mxu0
    %v3400 = vadd.f32 %v3387, %v3399
    %v3401 = vpop.f32.mrf.mxu0
    %3402 = vdwg.mxu0
    %3403 = vmatpush.bf16.msra.mxu0 %v2844
    %3404 = vmatpush.bf16.msra.mxu0 %v2837
    %3405 = vmatpush.bf16.msra.mxu0 %v2830
    %3406 = vmatpush.bf16.msra.mxu0 %v2823
    %3407 = vmatpush.bf16.msra.mxu0 %v2816
    %3408 = vmatpush.bf16.msra.mxu0 %v2809
    %3409 = vmatpush.bf16.msra.mxu0 %v2802
    %3410 = vmatpush.bf16.msra.mxu0 %v2795
    %3411 = vmatmul.bf16.gmra.mxu0 %v2020
    %v3412 = vpop.f32.mrf.mxu0
    %v3413 = vadd.f32 %v2231, %v3412
    %v3414 = vpop.f32.mrf.mxu0
    %3415 = vdwg.mxu0
    %3416 = vmatpush.bf16.msra.mxu0 %v2900
    %3417 = vmatpush.bf16.msra.mxu0 %v2893
    %3418 = vmatpush.bf16.msra.mxu0 %v2886
    %3419 = vmatpush.bf16.msra.mxu0 %v2879
    %3420 = vmatpush.bf16.msra.mxu0 %v2872
    %3421 = vmatpush.bf16.msra.mxu0 %v2865
    %3422 = vmatpush.bf16.msra.mxu0 %v2858
    %3423 = vmatpush.bf16.msra.mxu0 %v2851
    %3424 = vmatmul.bf16.gmra.mxu0 %v2021
    %v3425 = vpop.f32.mrf.mxu0
    %v3426 = vadd.f32 %v3413, %v3425
    %v3427 = vpop.f32.mrf.mxu0
    %3428 = vdwg.mxu0
    %3429 = vmatpush.bf16.msra.mxu0 %v2956
    %3430 = vmatpush.bf16.msra.mxu0 %v2949
    %3431 = vmatpush.bf16.msra.mxu0 %v2942
    %3432 = vmatpush.bf16.msra.mxu0 %v2935
    %3433 = vmatpush.bf16.msra.mxu0 %v2928
    %3434 = vmatpush.bf16.msra.mxu0 %v2921
    %3435 = vmatpush.bf16.msra.mxu0 %v2914
    %3436 = vmatpush.bf16.msra.mxu0 %v2907
    %3437 = vmatmul.bf16.gmra.mxu0 %v2022
    %v3438 = vpop.f32.mrf.mxu0
    %v3439 = vadd.f32 %v3426, %v3438
    %v3440 = vpop.f32.mrf.mxu0
    %3441 = vdwg.mxu0
    %3442 = vmatpush.bf16.msra.mxu0 0
    %3443 = vmatpush.bf16.msra.mxu0 0
    %3444 = vmatpush.bf16.msra.mxu0 0
    %3445 = vmatpush.bf16.msra.mxu0 0
    %3446 = vmatpush.bf16.msra.mxu0 0
    %3447 = vmatpush.bf16.msra.mxu0 0
    %3448 = vmatpush.bf16.msra.mxu0 0
    %3449 = vmatpush.bf16.msra.mxu0 %v2963
    %3450 = vmatmul.bf16.gmra.mxu0 %v3141
    %v3451 = vpop.f32.mrf.mxu0
    %v3452 = vadd.f32 %v3439, %v3451
    %v3453 = vpop.f32.mrf.mxu0
    %3454 = vdwg.mxu0
    %3455 = vmatpush.bf16.msra.mxu0 %v2845
    %3456 = vmatpush.bf16.msra.mxu0 %v2838
    %3457 = vmatpush.bf16.msra.mxu0 %v2831
    %3458 = vmatpush.bf16.msra.mxu0 %v2824
    %3459 = vmatpush.bf16.msra.mxu0 %v2817
    %3460 = vmatpush.bf16.msra.mxu0 %v2810
    %3461 = vmatpush.bf16.msra.mxu0 %v2803
    %3462 = vmatpush.bf16.msra.mxu0 %v2796
    %3463 = vmatmul.bf16.gmra.mxu0 %v2020
    %v3464 = vpop.f32.mrf.mxu0
    %v3465 = vadd.f32 %v2232, %v3464
    %v3466 = vpop.f32.mrf.mxu0
    %3467 = vdwg.mxu0
    %3468 = vmatpush.bf16.msra.mxu0 %v2901
    %3469 = vmatpush.bf16.msra.mxu0 %v2894
    %3470 = vmatpush.bf16.msra.mxu0 %v2887
    %3471 = vmatpush.bf16.msra.mxu0 %v2880
    %3472 = vmatpush.bf16.msra.mxu0 %v2873
    %3473 = vmatpush.bf16.msra.mxu0 %v2866
    %3474 = vmatpush.bf16.msra.mxu0 %v2859
    %3475 = vmatpush.bf16.msra.mxu0 %v2852
    %3476 = vmatmul.bf16.gmra.mxu0 %v2021
    %v3477 = vpop.f32.mrf.mxu0
    %v3478 = vadd.f32 %v3465, %v3477
    %v3479 = vpop.f32.mrf.mxu0
    %3480 = vdwg.mxu0
    %3481 = vmatpush.bf16.msra.mxu0 %v2957
    %3482 = vmatpush.bf16.msra.mxu0 %v2950
    %3483 = vmatpush.bf16.msra.mxu0 %v2943
    %3484 = vmatpush.bf16.msra.mxu0 %v2936
    %3485 = vmatpush.bf16.msra.mxu0 %v2929
    %3486 = vmatpush.bf16.msra.mxu0 %v2922
    %3487 = vmatpush.bf16.msra.mxu0 %v2915
    %3488 = vmatpush.bf16.msra.mxu0 %v2908
    %3489 = vmatmul.bf16.gmra.mxu0 %v2022
    %v3490 = vpop.f32.mrf.mxu0
    %v3491 = vadd.f32 %v3478, %v3490
    %v3492 = vpop.f32.mrf.mxu0
    %3493 = vdwg.mxu0
    %3494 = vmatpush.bf16.msra.mxu0 0
    %3495 = vmatpush.bf16.msra.mxu0 0
    %3496 = vmatpush.bf16.msra.mxu0 0
    %3497 = vmatpush.bf16.msra.mxu0 0
    %3498 = vmatpush.bf16.msra.mxu0 0
    %3499 = vmatpush.bf16.msra.mxu0 0
    %3500 = vmatpush.bf16.msra.mxu0 0
    %3501 = vmatpush.bf16.msra.mxu0 %v2964
    %3502 = vmatmul.bf16.gmra.mxu0 %v3141
    %v3503 = vpop.f32.mrf.mxu0
    %v3504 = vadd.f32 %v3491, %v3503
    %v3505 = vpop.f32.mrf.mxu0
    %3506 = vdwg.mxu0
    %v3507 = vsub.f32 0.0, %v3192
    %v3508 = vsub.f32 0.0, %v3244
    %v3509 = vsub.f32 0.0, %v3296
    %v3510 = vsub.f32 0.0, %v3348
    %v3511 = vsub.f32 0.0, %v3400
    %v3512 = vsub.f32 0.0, %v3452
    %v3513 = vsub.f32 0.0, %v3504
    %v3514 = vmul.f32 %v3507, 1.442695
    %v3515 = vpow.pop %v3514
    %v3516 = vmul.f32 %v3508, 1.442695
    %v3517 = vpow.pop %v3516
    %v3518 = vmul.f32 %v3509, 1.442695
    %v3519 = vpow.pop %v3518
    %v3520 = vmul.f32 %v3510, 1.442695
    %v3521 = vpow.pop %v3520
    %v3522 = vmul.f32 %v3511, 1.442695
    %v3523 = vpow.pop %v3522
    %v3524 = vmul.f32 %v3512, 1.442695
    %v3525 = vpow.pop %v3524
    %v3526 = vmul.f32 %v3513, 1.442695
    %v3527 = vpow.pop %v3526
    %v3528 = vadd.f32 %v3515, 1.0
    %v3529 = vadd.f32 %v3517, 1.0
    %v3530 = vadd.f32 %v3519, 1.0
    %v3531 = vadd.f32 %v3521, 1.0
    %v3532 = vadd.f32 %v3523, 1.0
    %v3533 = vadd.f32 %v3525, 1.0
    %v3534 = vadd.f32 %v3527, 1.0
    %v3535 = vrcp.pop %v3528
    %v3536 = vrcp.pop %v3529
    %v3537 = vrcp.pop %v3530
    %v3538 = vrcp.pop %v3531
    %v3539 = vrcp.pop %v3532
    %v3540 = vrcp.pop %v3533
    %v3541 = vrcp.pop %v3534
    %3542 = vst [vmem:[#allocation2] sm:$0xff] %v3535
    %3543 = vst [vmem:[#allocation2 + $0x8] sm:$0xff] %v3536
    %3544 = vst [vmem:[#allocation2 + $0x10] sm:$0xff] %v3537
    %3545 = vst [vmem:[#allocation2 + $0x18] sm:$0xff] %v3538
    %3546 = vst [vmem:[#allocation2 + $0x20] sm:$0xff] %v3539
    %3547 = vst [vmem:[#allocation2 + $0x28] sm:$0xff] %v3540
    %3548 = vst.msk [vmem:[#allocation2 + $0x30] sm:$0xff] %vm1255, %v3541
    %3549 = vst.msk [vmem:[#allocation4] sm:$0xff] %vm1947, %v1887
    %3551 = vrot.lane.b32.xlu0 %v1887, 108
    %v3552 = vpop.permute.xlu0 %3551
    %3554 = vst.msk [vmem:[#allocation6] sm:$0xff] %vm1947, %v3552
    // Predicated region
    $region42: #{tpu_custom_call.1} parent=1 // pred_check
      _
    $region43: #{tpu_custom_call.1} parent=1 // pred_check_branch
      %3556 = sbr.rel (0) target = $region45
    $region44: #{tpu_custom_call.1} parent=1 // pred_region
      %3558 = vsyncadd [#allocation3], 0
      %s3560 = sshll.u32 [#allocation2], 4
      %s3561 = int_to_ptr.vmem [resolvable:$true] %s3560
      %s3562 = sshll.u32 %s10, 4
      %s3563 = int_to_ptr.hbm [resolvable:$true] %s3562
      %3565 = dma.vmem_to_hbm [thread:$0]  %s3561, 896, %s3563, [#allocation3]
    $region45: #{tpu_custom_call.1} parent=1 // pred_fallthru
      _
    // Predicated region
    $region46: #{tpu_custom_call.1} parent=1 // pred_check
      _
    $region47: #{tpu_custom_call.1} parent=1 // pred_check_branch
      %3567 = sbr.rel (0) target = $region49
    $region48: #{tpu_custom_call.1} parent=1 // pred_region
      %3569 = vsyncadd [#allocation5], 0
      %s3571 = sshll.u32 [#allocation4], 4
      %s3572 = int_to_ptr.vmem [resolvable:$true] %s3571
      %s3573 = sshll.u32 %s11, 4
      %s3574 = int_to_ptr.hbm [resolvable:$true] %s3573
      %3576 = dma.vmem_to_hbm [thread:$0]  %s3572, 128, %s3574, [#allocation5]
    $region49: #{tpu_custom_call.1} parent=1 // pred_fallthru
      _
    // Predicated region
    $region50: #{tpu_custom_call.1} parent=1 // pred_check
      _
    $region51: #{tpu_custom_call.1} parent=1 // pred_check_branch
      %3578 = sbr.rel (0) target = $region53
    $region52: #{tpu_custom_call.1} parent=1 // pred_region
      %3580 = vsyncadd [#allocation5], 0
      %s3582 = sshll.u32 [#allocation6], 4
      %s3583 = int_to_ptr.vmem [resolvable:$true] %s3582
      %s3584 = sshll.u32 %s12, 4
      %s3585 = int_to_ptr.hbm [resolvable:$true] %s3584
      %3587 = dma.vmem_to_hbm [thread:$0]  %s3583, 128, %s3585, [#allocation5]
    $region53: #{tpu_custom_call.1} parent=1 // pred_fallthru
      _
    // Predicated region
    $region54: #{tpu_custom_call.1} parent=1 // pred_check
      _
    $region55: #{tpu_custom_call.1} parent=1 // pred_check_branch
      %3589 = sbr.rel (0) target = $region57
    $region56: #{tpu_custom_call.1} parent=1 // pred_region
      %3591 = dma.done [#allocation3], 896
    $region57: #{tpu_custom_call.1} parent=1 // pred_fallthru
      _
    // Predicated region
    $region58: #{tpu_custom_call.1} parent=1 // pred_check
      _
    $region59: #{tpu_custom_call.1} parent=1 // pred_check_branch
      %3593 = sbr.rel (0) target = $region61
    $region60: #{tpu_custom_call.1} parent=1 // pred_region
      %3595 = dma.done [#allocation5], 128
    $region61: #{tpu_custom_call.1} parent=1 // pred_fallthru
      _
    // Predicated region
    $region62: #{tpu_custom_call.1} parent=1 // pred_check
      _
    $region63: #{tpu_custom_call.1} parent=1 // pred_check_branch
      %3597 = sbr.rel (0) target = $region65
    $region64: #{tpu_custom_call.1} parent=1 // pred_region
      %3599 = dma.done [#allocation5], 128
    $region65: #{tpu_custom_call.1} parent=1 // pred_fallthru
      _
    %3600 = vsyncpa [#allocation3], 1
    %3601 = vsyncpa [#allocation5], 1

</llo_original>
